<compile_context>
chip_gen: v7x
topology: tpu7x:2x2x1
jax: 0.10.0
libtpu: 0.0.40
codegen_flags: <defaults>
</compile_context>

<pallas_src>
import functools

import jax
import jax.numpy as jnp
from jax.experimental import pallas as pl
from jax.experimental.pallas import tpu as pltpu


# -----------------------------------------------------------------------------
# Fused Pallas kernel: conv3x3/s2 + swish -> GAP -> head + swish -> fc
# -----------------------------------------------------------------------------
def _fused_kernel(x_even_ref, x_odd_ref, m_ref, sbias_ref, hweff_ref, hb_ref,
                  fcw_ref, fcb_ref, o_ref, *, S, Ho, Wo, C, E, num_classes):
    """One grid step processes one batch element (= S slices).

    x_even_ref : (S, Ho+1, Wp)  even rows of the zero-padded slice images
    x_odd_ref  : (S, Ho+1, Wp)  odd rows
    m_ref      : (3, Wp, Wo*C)  conv-as-matmul weights, one per kh tap
    sbias_ref  : (1, Wo*C)      stem bias tiled over Wo
    hweff_ref  : (Wo*C, E)      head weight with column-sum & 1/(Ho*Wo) folded in
    hb_ref     : (1, E)
    fcw_ref    : (S, E, num_classes)
    fcb_ref    : (1, num_classes)
    o_ref      : (1, 1, num_classes)
    """
    Wp = x_even_ref.shape[-1]
    WoC = Wo * C

    xe = x_even_ref[...]                               # (S, Ho+1, Wp)
    xo = x_odd_ref[...]

    # kh taps -> row-shifted views (input rows 2i, 2i+1, 2i+2), flattened 2-D.
    y0 = xe[:, 0:Ho, :].reshape(S * Ho, Wp)
    y1 = xo[:, 0:Ho, :].reshape(S * Ho, Wp)
    y2 = xe[:, 1:Ho + 1, :].reshape(S * Ho, Wp)

    # Stem 3x3/s2 conv as three MXU matmuls (kw taps, stride-2 column pick and
    # output channels are folded into m_ref).
    z = jnp.dot(y0, m_ref[0], preferred_element_type=jnp.float32)
    z = z + jnp.dot(y1, m_ref[1], preferred_element_type=jnp.float32)
    z = z + jnp.dot(y2, m_ref[2], preferred_element_type=jnp.float32)
    z = z + sbias_ref[...]                             # (S*Ho, Wo*C) + (1, Wo*C)
    a = z * jax.nn.sigmoid(z)                          # swish, f32 everywhere

    # Global average pool: sum over output rows here; the column-sum and the
    # 1/(Ho*Wo) factor are already folded into hweff_ref.
    a_row = jnp.sum(a.reshape(S, Ho, WoC), axis=1)     # (S, Wo*C)

    h = jnp.dot(a_row, hweff_ref[...], preferred_element_type=jnp.float32)
    h = h + hb_ref[...]
    emb = h * jax.nn.sigmoid(h)                        # (S, E) slice embeddings

    # Wrapper fc:  concat(embeddings) @ fc_w + fc_b  ==  sum_s emb[s] @ fc_w[s].
    acc = jnp.zeros((1, num_classes), jnp.float32)
    for s in range(S):                                 # S is small; unrolled
        acc = acc + jnp.dot(emb[s:s + 1, :], fcw_ref[s],
                            preferred_element_type=jnp.float32)
    logits = acc + fcb_ref[...]
    o_ref[...] = logits.reshape(1, 1, num_classes).astype(o_ref.dtype)


# -----------------------------------------------------------------------------
# Parameters + one-time packing of the conv/pool folds
# -----------------------------------------------------------------------------
def init_params(key, c_stem=48, embedding_size=64, num_slices=10, num_classes=2):
    k1, k2, k3, k4, k5, k6 = jax.random.split(key, 6)
    return {
        # stem conv weight laid out (kh, kw, C_out); C_in == 1 (grayscale)
        "stem_w": 0.1 * jax.random.normal(k1, (3, 3, c_stem), jnp.float32),
        "stem_b": 0.1 * jax.random.normal(k2, (c_stem,), jnp.float32),
        "head_w": 0.1 * jax.random.normal(k3, (c_stem, embedding_size), jnp.float32),
        "head_b": 0.1 * jax.random.normal(k4, (embedding_size,), jnp.float32),
        "fc_w": 0.1 * jax.random.normal(
            k5, (embedding_size * num_slices, num_classes), jnp.float32),
        "fc_b": 0.1 * jax.random.normal(k6, (num_classes,), jnp.float32),
    }


def pack_params(params, H, W, num_slices, num_classes):
    """One-time weight preprocessing (kept out of the per-step forward)."""
    C = params["stem_b"].shape[0]
    E = params["head_b"].shape[0]
    Ho, Wo = H // 2, W // 2
    Wp = W + 2

    # Conv-as-matmul weights: M[dy, p, j*C + c] = stem_w[dy, dx, c] iff p == 2j+dx.
    M = jnp.zeros((3, Wp, Wo, C), jnp.float32)
    jj = jnp.arange(Wo)
    for dy in range(3):
        for dx in range(3):
            M = M.at[dy, 2 * jj + dx, jj, :].add(params["stem_w"][dy, dx, :])
    return {
        "conv_mats": M.reshape(3, Wp, Wo * C),
        "stem_b_tiled": jnp.tile(params["stem_b"], (Wo,)).reshape(1, Wo * C),
        "head_w_eff": jnp.tile(params["head_w"] / float(Ho * Wo), (Wo, 1)),
        "head_b": params["head_b"].reshape(1, E),
        "fc_w3": params["fc_w"].reshape(num_slices, E, num_classes),
        "fc_b": params["fc_b"].reshape(1, num_classes),
    }


# -----------------------------------------------------------------------------
# Forward
# -----------------------------------------------------------------------------
def model_forward(x_nchw, packed, *, num_slices=10, num_classes=2):
    N, Cin, H, W = x_nchw.shape
    assert Cin == 1 and N % num_slices == 0 and H % 2 == 0 and W % 2 == 0
    B = N // num_slices
    S = num_slices
    Ho, Wo = H // 2, W // 2
    Wp = W + 2
    He = Ho + 1
    WoC = packed["conv_mats"].shape[-1]
    C = WoC // Wo
    E = packed["head_b"].shape[-1]

    # 1-channel NCHW -> (N, H, W); zero-pad the 3x3 halo and split even/odd
    # rows (no data duplication -- replaces the 9x im2col expansion).
    x3 = x_nchw.reshape(N, H, W)
    xp = jnp.pad(x3, ((0, 0), (1, 1), (1, 1)))
    x_even = xp[:, 0::2, :]                            # (N, Ho+1, Wp)
    x_odd = xp[:, 1::2, :]                             # (N, Ho+1, Wp)

    kernel = functools.partial(_fused_kernel, S=S, Ho=Ho, Wo=Wo, C=C, E=E,
                               num_classes=num_classes)
    out = pl.pallas_call(
        kernel,
        out_shape=jax.ShapeDtypeStruct((B, 1, num_classes), jnp.float32),
        grid_spec=pltpu.PrefetchScalarGridSpec(
            num_scalar_prefetch=0,
            grid=(B,),
            in_specs=[
                pl.BlockSpec((S, He, Wp), lambda b: (b, 0, 0)),
                pl.BlockSpec((S, He, Wp), lambda b: (b, 0, 0)),
                pl.BlockSpec((3, Wp, WoC), lambda b: (0, 0, 0)),
                pl.BlockSpec((1, WoC), lambda b: (0, 0)),
                pl.BlockSpec((WoC, E), lambda b: (0, 0)),
                pl.BlockSpec((1, E), lambda b: (0, 0)),
                pl.BlockSpec((S, E, num_classes), lambda b: (0, 0, 0)),
                pl.BlockSpec((1, num_classes), lambda b: (0, 0)),
            ],
            out_specs=pl.BlockSpec((1, 1, num_classes), lambda b: (b, 0, 0)),
        ),
        compiler_params=pltpu.CompilerParams(
            dimension_semantics=("parallel",)),
    )(x_even, x_odd, packed["conv_mats"], packed["stem_b_tiled"],
      packed["head_w_eff"], packed["head_b"], packed["fc_w3"], packed["fc_b"])
    return out.reshape(B, num_classes)


# -----------------------------------------------------------------------------
# Plain-JAX reference of the same stub network (for a numerical check)
# -----------------------------------------------------------------------------
def reference_forward(x_nchw, params, num_slices, num_classes):
    w = jnp.transpose(params["stem_w"], (2, 0, 1))[:, None, :, :]   # (C,1,3,3)
    y = jax.lax.conv_general_dilated(
        x_nchw, w, window_strides=(2, 2), padding=((1, 1), (1, 1)),
        dimension_numbers=("NCHW", "OIHW", "NCHW"))
    y = y + params["stem_b"][None, :, None, None]
    y = y * jax.nn.sigmoid(y)
    pooled = jnp.mean(y, axis=(2, 3))                                # (N, C)
    h = pooled @ params["head_w"] + params["head_b"]
    emb = h * jax.nn.sigmoid(h)
    E = params["head_b"].shape[0]
    flat = emb.reshape(-1, num_slices * E)
    return flat @ params["fc_w"] + params["fc_b"]


# -----------------------------------------------------------------------------
if __name__ == "__main__":
    num_slices = 10
    embedding_size = 64
    num_classes = 2
    batch = 2
    H = W = 16

    key = jax.random.PRNGKey(0)
    kx, kp = jax.random.split(key)
    x = jax.random.normal(kx, (batch * num_slices, 1, H, W), jnp.float32)
    params = init_params(kp, c_stem=48, embedding_size=embedding_size,
                         num_slices=num_slices, num_classes=num_classes)
    packed = pack_params(params, H, W, num_slices, num_classes)

    fwd = jax.jit(functools.partial(model_forward,
                                    num_slices=num_slices,
                                    num_classes=num_classes))
    out = jax.block_until_ready(fwd(x, packed))
    assert out.shape == (batch, num_classes), out.shape
    assert bool(jnp.all(jnp.isfinite(out)))

    ref = reference_forward(x, params, num_slices, num_classes)
    err = float(jnp.max(jnp.abs(out - ref)))
    assert err < 5e-2, f"max abs err {err}"
    print("KERNEL_OK")
</pallas_src>

<mosaic_0001>
module attributes {stable_mosaic.version = 11 : i64} {
  func.func @_fused_kernel(%arg0: i32, %arg1: memref<10x9x18xf32, #tpu.memory_space<vmem>>, %arg2: memref<10x9x18xf32, #tpu.memory_space<vmem>>, %arg3: memref<3x18x384xf32, #tpu.memory_space<vmem>>, %arg4: memref<1x384xf32, #tpu.memory_space<vmem>>, %arg5: memref<384x64xf32, #tpu.memory_space<vmem>>, %arg6: memref<1x64xf32, #tpu.memory_space<vmem>>, %arg7: memref<10x64x2xf32, #tpu.memory_space<vmem>>, %arg8: memref<1x2xf32, #tpu.memory_space<vmem>>, %arg9: memref<1x1x2xf32, #tpu.memory_space<vmem>>) attributes {dimension_semantics = [#tpu.dimension_semantics<parallel>], iteration_bounds = array<i64: 2>, scalar_prefetch = 0 : i64, scratch_operands = 0 : i64, tpu.core_type = #tpu.core_type<tc>, window_params = [{transform_indices = @transform_0, window_bounds = array<i64: 10, 9, 18>}, {transform_indices = @transform_1, window_bounds = array<i64: 10, 9, 18>}, {pipeline_mode = #tpu.pipeline_mode<synchronous>, transform_indices = @transform_2, window_bounds = array<i64: 3, 18, 384>}, {pipeline_mode = #tpu.pipeline_mode<synchronous>, transform_indices = @transform_3, window_bounds = array<i64: 1, 384>}, {pipeline_mode = #tpu.pipeline_mode<synchronous>, transform_indices = @transform_4, window_bounds = array<i64: 384, 64>}, {pipeline_mode = #tpu.pipeline_mode<synchronous>, transform_indices = @transform_5, window_bounds = array<i64: 1, 64>}, {pipeline_mode = #tpu.pipeline_mode<synchronous>, transform_indices = @transform_6, window_bounds = array<i64: 10, 64, 2>}, {pipeline_mode = #tpu.pipeline_mode<synchronous>, transform_indices = @transform_7, window_bounds = array<i64: 1, 2>}, {transform_indices = @transform_8, window_bounds = array<i64: 1, 1, 2>}]} {
    %c0 = arith.constant 0 : index
    %c0_0 = arith.constant 0 : index
    %c0_1 = arith.constant 0 : index
    %0 = vector.load %arg1[%c0, %c0_0, %c0_1] : memref<10x9x18xf32, #tpu.memory_space<vmem>>, vector<10x9x18xf32>
    %c0_2 = arith.constant 0 : index
    %c0_3 = arith.constant 0 : index
    %c0_4 = arith.constant 0 : index
    %1 = vector.load %arg2[%c0_2, %c0_3, %c0_4] : memref<10x9x18xf32, #tpu.memory_space<vmem>>, vector<10x9x18xf32>
    %2 = vector.extract_strided_slice %0 {offsets = [0, 0, 0], sizes = [10, 8, 18], strides = [1, 1, 1]} : vector<10x9x18xf32> to vector<10x8x18xf32>
    %3 = vector.shape_cast %2 : vector<10x8x18xf32> to vector<80x18xf32>
    %4 = vector.extract_strided_slice %1 {offsets = [0, 0, 0], sizes = [10, 8, 18], strides = [1, 1, 1]} : vector<10x9x18xf32> to vector<10x8x18xf32>
    %5 = vector.shape_cast %4 : vector<10x8x18xf32> to vector<80x18xf32>
    %6 = vector.extract_strided_slice %0 {offsets = [0, 1, 0], sizes = [10, 8, 18], strides = [1, 1, 1]} : vector<10x9x18xf32> to vector<10x8x18xf32>
    %7 = vector.shape_cast %6 : vector<10x8x18xf32> to vector<80x18xf32>
    %c0_5 = arith.constant 0 : index
    %c0_6 = arith.constant 0 : index
    %c0_7 = arith.constant 0 : index
    %8 = vector.load %arg3[%c0_5, %c0_6, %c0_7] : memref<3x18x384xf32, #tpu.memory_space<vmem>>, vector<1x18x384xf32>
    %9 = vector.shape_cast %8 : vector<1x18x384xf32> to vector<18x384xf32>
    %cst = arith.constant dense<0.000000e+00> : vector<80x384xf32>
    %10 = tpu.matmul %3, %9, %cst {dimension_numbers = #tpu.dot_dimension_numbers<[1], [0], [0], [1], [0, 0, 1, 1], [], []>} : vector<80x18xf32>, vector<18x384xf32>, vector<80x384xf32> -> vector<80x384xf32>
    %c1 = arith.constant 1 : index
    %c0_8 = arith.constant 0 : index
    %c0_9 = arith.constant 0 : index
    %11 = vector.load %arg3[%c1, %c0_8, %c0_9] : memref<3x18x384xf32, #tpu.memory_space<vmem>>, vector<1x18x384xf32>
    %12 = vector.shape_cast %11 : vector<1x18x384xf32> to vector<18x384xf32>
    %cst_10 = arith.constant dense<0.000000e+00> : vector<80x384xf32>
    %13 = tpu.matmul %5, %12, %cst_10 {dimension_numbers = #tpu.dot_dimension_numbers<[1], [0], [0], [1], [0, 0, 1, 1], [], []>} : vector<80x18xf32>, vector<18x384xf32>, vector<80x384xf32> -> vector<80x384xf32>
    %14 = arith.addf %10, %13 : vector<80x384xf32>
    %c2 = arith.constant 2 : index
    %c0_11 = arith.constant 0 : index
    %c0_12 = arith.constant 0 : index
    %15 = vector.load %arg3[%c2, %c0_11, %c0_12] : memref<3x18x384xf32, #tpu.memory_space<vmem>>, vector<1x18x384xf32>
    %16 = vector.shape_cast %15 : vector<1x18x384xf32> to vector<18x384xf32>
    %cst_13 = arith.constant dense<0.000000e+00> : vector<80x384xf32>
    %17 = tpu.matmul %7, %16, %cst_13 {dimension_numbers = #tpu.dot_dimension_numbers<[1], [0], [0], [1], [0, 0, 1, 1], [], []>} : vector<80x18xf32>, vector<18x384xf32>, vector<80x384xf32> -> vector<80x384xf32>
    %18 = arith.addf %14, %17 : vector<80x384xf32>
    %c0_14 = arith.constant 0 : index
    %c0_15 = arith.constant 0 : index
    %19 = vector.load %arg4[%c0_14, %c0_15] : memref<1x384xf32, #tpu.memory_space<vmem>>, vector<1x384xf32>
    %20 = vector.broadcast %19 : vector<1x384xf32> to vector<80x384xf32>
    %21 = arith.addf %18, %20 : vector<80x384xf32>
    %22 = arith.negf %21 : vector<80x384xf32>
    %23 = math.exp %22 : vector<80x384xf32>
    %cst_16 = arith.constant 1.000000e+00 : f32
    %24 = vector.broadcast %cst_16 : f32 to vector<80x384xf32>
    %25 = arith.addf %24, %23 : vector<80x384xf32>
    %26 = arith.divf %24, %25 : vector<80x384xf32>
    %27 = arith.mulf %21, %26 : vector<80x384xf32>
    %28 = vector.shape_cast %27 : vector<80x384xf32> to vector<10x8x384xf32>
    %cst_17 = arith.constant dense<0.000000e+00> : vector<10x384xf32>
    %29 = vector.multi_reduction <add>, %28, %cst_17 [1] : vector<10x8x384xf32> to vector<10x384xf32>
    %c0_18 = arith.constant 0 : index
    %c0_19 = arith.constant 0 : index
    %30 = vector.load %arg5[%c0_18, %c0_19] : memref<384x64xf32, #tpu.memory_space<vmem>>, vector<384x64xf32>
    %cst_20 = arith.constant dense<0.000000e+00> : vector<10x64xf32>
    %31 = tpu.matmul %29, %30, %cst_20 {dimension_numbers = #tpu.dot_dimension_numbers<[1], [0], [0], [1], [0, 0, 1, 1], [], []>} : vector<10x384xf32>, vector<384x64xf32>, vector<10x64xf32> -> vector<10x64xf32>
    %c0_21 = arith.constant 0 : index
    %c0_22 = arith.constant 0 : index
    %32 = vector.load %arg6[%c0_21, %c0_22] : memref<1x64xf32, #tpu.memory_space<vmem>>, vector<1x64xf32>
    %33 = vector.broadcast %32 : vector<1x64xf32> to vector<10x64xf32>
    %34 = arith.addf %31, %33 : vector<10x64xf32>
    %35 = arith.negf %34 : vector<10x64xf32>
    %36 = math.exp %35 : vector<10x64xf32>
    %cst_23 = arith.constant 1.000000e+00 : f32
    %37 = vector.broadcast %cst_23 : f32 to vector<10x64xf32>
    %38 = arith.addf %37, %36 : vector<10x64xf32>
    %39 = arith.divf %37, %38 : vector<10x64xf32>
    %40 = arith.mulf %34, %39 : vector<10x64xf32>
    %cst_24 = arith.constant 0.000000e+00 : f32
    %41 = vector.broadcast %cst_24 : f32 to vector<1x2xf32>
    %42 = vector.extract_strided_slice %40 {offsets = [0, 0], sizes = [1, 64], strides = [1, 1]} : vector<10x64xf32> to vector<1x64xf32>
    %c0_25 = arith.constant 0 : index
    %c0_26 = arith.constant 0 : index
    %c0_27 = arith.constant 0 : index
    %43 = vector.load %arg7[%c0_25, %c0_26, %c0_27] : memref<10x64x2xf32, #tpu.memory_space<vmem>>, vector<1x64x2xf32>
    %44 = vector.shape_cast %43 : vector<1x64x2xf32> to vector<64x2xf32>
    %cst_28 = arith.constant dense<0.000000e+00> : vector<1x2xf32>
    %45 = tpu.matmul %42, %44, %cst_28 {dimension_numbers = #tpu.dot_dimension_numbers<[1], [0], [0], [1], [0, 0, 1, 1], [], []>} : vector<1x64xf32>, vector<64x2xf32>, vector<1x2xf32> -> vector<1x2xf32>
    %46 = arith.addf %41, %45 : vector<1x2xf32>
    %47 = vector.extract_strided_slice %40 {offsets = [1, 0], sizes = [1, 64], strides = [1, 1]} : vector<10x64xf32> to vector<1x64xf32>
    %c1_29 = arith.constant 1 : index
    %c0_30 = arith.constant 0 : index
    %c0_31 = arith.constant 0 : index
    %48 = vector.load %arg7[%c1_29, %c0_30, %c0_31] : memref<10x64x2xf32, #tpu.memory_space<vmem>>, vector<1x64x2xf32>
    %49 = vector.shape_cast %48 : vector<1x64x2xf32> to vector<64x2xf32>
    %cst_32 = arith.constant dense<0.000000e+00> : vector<1x2xf32>
    %50 = tpu.matmul %47, %49, %cst_32 {dimension_numbers = #tpu.dot_dimension_numbers<[1], [0], [0], [1], [0, 0, 1, 1], [], []>} : vector<1x64xf32>, vector<64x2xf32>, vector<1x2xf32> -> vector<1x2xf32>
    %51 = arith.addf %46, %50 : vector<1x2xf32>
    %52 = vector.extract_strided_slice %40 {offsets = [2, 0], sizes = [1, 64], strides = [1, 1]} : vector<10x64xf32> to vector<1x64xf32>
    %c2_33 = arith.constant 2 : index
    %c0_34 = arith.constant 0 : index
    %c0_35 = arith.constant 0 : index
    %53 = vector.load %arg7[%c2_33, %c0_34, %c0_35] : memref<10x64x2xf32, #tpu.memory_space<vmem>>, vector<1x64x2xf32>
    %54 = vector.shape_cast %53 : vector<1x64x2xf32> to vector<64x2xf32>
    %cst_36 = arith.constant dense<0.000000e+00> : vector<1x2xf32>
    %55 = tpu.matmul %52, %54, %cst_36 {dimension_numbers = #tpu.dot_dimension_numbers<[1], [0], [0], [1], [0, 0, 1, 1], [], []>} : vector<1x64xf32>, vector<64x2xf32>, vector<1x2xf32> -> vector<1x2xf32>
    %56 = arith.addf %51, %55 : vector<1x2xf32>
    %57 = vector.extract_strided_slice %40 {offsets = [3, 0], sizes = [1, 64], strides = [1, 1]} : vector<10x64xf32> to vector<1x64xf32>
    %c3 = arith.constant 3 : index
    %c0_37 = arith.constant 0 : index
    %c0_38 = arith.constant 0 : index
    %58 = vector.load %arg7[%c3, %c0_37, %c0_38] : memref<10x64x2xf32, #tpu.memory_space<vmem>>, vector<1x64x2xf32>
    %59 = vector.shape_cast %58 : vector<1x64x2xf32> to vector<64x2xf32>
    %cst_39 = arith.constant dense<0.000000e+00> : vector<1x2xf32>
    %60 = tpu.matmul %57, %59, %cst_39 {dimension_numbers = #tpu.dot_dimension_numbers<[1], [0], [0], [1], [0, 0, 1, 1], [], []>} : vector<1x64xf32>, vector<64x2xf32>, vector<1x2xf32> -> vector<1x2xf32>
    %61 = arith.addf %56, %60 : vector<1x2xf32>
    %62 = vector.extract_strided_slice %40 {offsets = [4, 0], sizes = [1, 64], strides = [1, 1]} : vector<10x64xf32> to vector<1x64xf32>
    %c4 = arith.constant 4 : index
    %c0_40 = arith.constant 0 : index
    %c0_41 = arith.constant 0 : index
    %63 = vector.load %arg7[%c4, %c0_40, %c0_41] : memref<10x64x2xf32, #tpu.memory_space<vmem>>, vector<1x64x2xf32>
    %64 = vector.shape_cast %63 : vector<1x64x2xf32> to vector<64x2xf32>
    %cst_42 = arith.constant dense<0.000000e+00> : vector<1x2xf32>
    %65 = tpu.matmul %62, %64, %cst_42 {dimension_numbers = #tpu.dot_dimension_numbers<[1], [0], [0], [1], [0, 0, 1, 1], [], []>} : vector<1x64xf32>, vector<64x2xf32>, vector<1x2xf32> -> vector<1x2xf32>
    %66 = arith.addf %61, %65 : vector<1x2xf32>
    %67 = vector.extract_strided_slice %40 {offsets = [5, 0], sizes = [1, 64], strides = [1, 1]} : vector<10x64xf32> to vector<1x64xf32>
    %c5 = arith.constant 5 : index
    %c0_43 = arith.constant 0 : index
    %c0_44 = arith.constant 0 : index
    %68 = vector.load %arg7[%c5, %c0_43, %c0_44] : memref<10x64x2xf32, #tpu.memory_space<vmem>>, vector<1x64x2xf32>
    %69 = vector.shape_cast %68 : vector<1x64x2xf32> to vector<64x2xf32>
    %cst_45 = arith.constant dense<0.000000e+00> : vector<1x2xf32>
    %70 = tpu.matmul %67, %69, %cst_45 {dimension_numbers = #tpu.dot_dimension_numbers<[1], [0], [0], [1], [0, 0, 1, 1], [], []>} : vector<1x64xf32>, vector<64x2xf32>, vector<1x2xf32> -> vector<1x2xf32>
    %71 = arith.addf %66, %70 : vector<1x2xf32>
    %72 = vector.extract_strided_slice %40 {offsets = [6, 0], sizes = [1, 64], strides = [1, 1]} : vector<10x64xf32> to vector<1x64xf32>
    %c6 = arith.constant 6 : index
    %c0_46 = arith.constant 0 : index
    %c0_47 = arith.constant 0 : index
    %73 = vector.load %arg7[%c6, %c0_46, %c0_47] : memref<10x64x2xf32, #tpu.memory_space<vmem>>, vector<1x64x2xf32>
    %74 = vector.shape_cast %73 : vector<1x64x2xf32> to vector<64x2xf32>
    %cst_48 = arith.constant dense<0.000000e+00> : vector<1x2xf32>
    %75 = tpu.matmul %72, %74, %cst_48 {dimension_numbers = #tpu.dot_dimension_numbers<[1], [0], [0], [1], [0, 0, 1, 1], [], []>} : vector<1x64xf32>, vector<64x2xf32>, vector<1x2xf32> -> vector<1x2xf32>
    %76 = arith.addf %71, %75 : vector<1x2xf32>
    %77 = vector.extract_strided_slice %40 {offsets = [7, 0], sizes = [1, 64], strides = [1, 1]} : vector<10x64xf32> to vector<1x64xf32>
    %c7 = arith.constant 7 : index
    %c0_49 = arith.constant 0 : index
    %c0_50 = arith.constant 0 : index
    %78 = vector.load %arg7[%c7, %c0_49, %c0_50] : memref<10x64x2xf32, #tpu.memory_space<vmem>>, vector<1x64x2xf32>
    %79 = vector.shape_cast %78 : vector<1x64x2xf32> to vector<64x2xf32>
    %cst_51 = arith.constant dense<0.000000e+00> : vector<1x2xf32>
    %80 = tpu.matmul %77, %79, %cst_51 {dimension_numbers = #tpu.dot_dimension_numbers<[1], [0], [0], [1], [0, 0, 1, 1], [], []>} : vector<1x64xf32>, vector<64x2xf32>, vector<1x2xf32> -> vector<1x2xf32>
    %81 = arith.addf %76, %80 : vector<1x2xf32>
    %82 = vector.extract_strided_slice %40 {offsets = [8, 0], sizes = [1, 64], strides = [1, 1]} : vector<10x64xf32> to vector<1x64xf32>
    %c8 = arith.constant 8 : index
    %c0_52 = arith.constant 0 : index
    %c0_53 = arith.constant 0 : index
    %83 = vector.load %arg7[%c8, %c0_52, %c0_53] : memref<10x64x2xf32, #tpu.memory_space<vmem>>, vector<1x64x2xf32>
    %84 = vector.shape_cast %83 : vector<1x64x2xf32> to vector<64x2xf32>
    %cst_54 = arith.constant dense<0.000000e+00> : vector<1x2xf32>
    %85 = tpu.matmul %82, %84, %cst_54 {dimension_numbers = #tpu.dot_dimension_numbers<[1], [0], [0], [1], [0, 0, 1, 1], [], []>} : vector<1x64xf32>, vector<64x2xf32>, vector<1x2xf32> -> vector<1x2xf32>
    %86 = arith.addf %81, %85 : vector<1x2xf32>
    %87 = vector.extract_strided_slice %40 {offsets = [9, 0], sizes = [1, 64], strides = [1, 1]} : vector<10x64xf32> to vector<1x64xf32>
    %c9 = arith.constant 9 : index
    %c0_55 = arith.constant 0 : index
    %c0_56 = arith.constant 0 : index
    %88 = vector.load %arg7[%c9, %c0_55, %c0_56] : memref<10x64x2xf32, #tpu.memory_space<vmem>>, vector<1x64x2xf32>
    %89 = vector.shape_cast %88 : vector<1x64x2xf32> to vector<64x2xf32>
    %cst_57 = arith.constant dense<0.000000e+00> : vector<1x2xf32>
    %90 = tpu.matmul %87, %89, %cst_57 {dimension_numbers = #tpu.dot_dimension_numbers<[1], [0], [0], [1], [0, 0, 1, 1], [], []>} : vector<1x64xf32>, vector<64x2xf32>, vector<1x2xf32> -> vector<1x2xf32>
    %91 = arith.addf %86, %90 : vector<1x2xf32>
    %c0_58 = arith.constant 0 : index
    %c0_59 = arith.constant 0 : index
    %92 = vector.load %arg8[%c0_58, %c0_59] : memref<1x2xf32, #tpu.memory_space<vmem>>, vector<1x2xf32>
    %93 = arith.addf %91, %92 : vector<1x2xf32>
    %94 = vector.shape_cast %93 : vector<1x2xf32> to vector<1x1x2xf32>
    %c0_60 = arith.constant 0 : index
    %c0_61 = arith.constant 0 : index
    %c0_62 = arith.constant 0 : index
    %95 = vector.load %arg9[%c0_60, %c0_61, %c0_62] : memref<1x1x2xf32, #tpu.memory_space<vmem>>, vector<1x1x2xf32>
    tpu.vector_store %arg9[%c0_60, %c0_61, %c0_62], %94 {strides = array<i32>} : memref<1x1x2xf32, #tpu.memory_space<vmem>>, vector<1x1x2xf32>,
    return
  }
  func.func @transform_0(%arg0: i32) -> (i32, i32, i32) {
    %c0_i32 = arith.constant 0 : i32
    %c0_i32_0 = arith.constant 0 : i32
    %c0_i32_1 = arith.constant 0 : i32
    return %arg0, %c0_i32, %c0_i32_0 : i32, i32, i32
  }
  func.func @transform_1(%arg0: i32) -> (i32, i32, i32) {
    %c0_i32 = arith.constant 0 : i32
    %c0_i32_0 = arith.constant 0 : i32
    %c0_i32_1 = arith.constant 0 : i32
    return %arg0, %c0_i32, %c0_i32_0 : i32, i32, i32
  }
  func.func @transform_2(%arg0: i32) -> (i32, i32, i32) {
    %c0_i32 = arith.constant 0 : i32
    %c0_i32_0 = arith.constant 0 : i32
    %c0_i32_1 = arith.constant 0 : i32
    %c0_i32_2 = arith.constant 0 : i32
    return %c0_i32, %c0_i32_0, %c0_i32_1 : i32, i32, i32
  }
  func.func @transform_3(%arg0: i32) -> (i32, i32) {
    %c0_i32 = arith.constant 0 : i32
    %c0_i32_0 = arith.constant 0 : i32
    %c0_i32_1 = arith.constant 0 : i32
    return %c0_i32, %c0_i32_0 : i32, i32
  }
  func.func @transform_4(%arg0: i32) -> (i32, i32) {
    %c0_i32 = arith.constant 0 : i32
    %c0_i32_0 = arith.constant 0 : i32
    %c0_i32_1 = arith.constant 0 : i32
    return %c0_i32, %c0_i32_0 : i32, i32
  }
  func.func @transform_5(%arg0: i32) -> (i32, i32) {
    %c0_i32 = arith.constant 0 : i32
    %c0_i32_0 = arith.constant 0 : i32
    %c0_i32_1 = arith.constant 0 : i32
    return %c0_i32, %c0_i32_0 : i32, i32
  }
  func.func @transform_6(%arg0: i32) -> (i32, i32, i32) {
    %c0_i32 = arith.constant 0 : i32
    %c0_i32_0 = arith.constant 0 : i32
    %c0_i32_1 = arith.constant 0 : i32
    %c0_i32_2 = arith.constant 0 : i32
    return %c0_i32, %c0_i32_0, %c0_i32_1 : i32, i32, i32
  }
  func.func @transform_7(%arg0: i32) -> (i32, i32) {
    %c0_i32 = arith.constant 0 : i32
    %c0_i32_0 = arith.constant 0 : i32
    %c0_i32_1 = arith.constant 0 : i32
    return %c0_i32, %c0_i32_0 : i32, i32
  }
  func.func @transform_8(%arg0: i32) -> (i32, i32, i32) {
    %c0_i32 = arith.constant 0 : i32
    %c0_i32_0 = arith.constant 0 : i32
    %c0_i32_1 = arith.constant 0 : i32
    return %arg0, %c0_i32, %c0_i32_0 : i32, i32, i32
  }
}

</mosaic_0001>

<llo_original>
// kernel: model_forward.1
$region0: #{model_forward.1}
  #allocation0 [shape = 'u32[]', space=smem, size = 0x4, offset = 0x4, fixed_abs, tag = 'smem constant byte address 0x4 - core index']
  #allocation1 [shape = 'u32[144,128]{1,0:T(1,128)}', space=vmem, size = 0x12000, scoped, tag = 'internal scratch']
  %s0 = inlined_call_operand.vmem [shape: f32[20,9,18], index: 0, kind: input, shape index: {}]
  %s1 = inlined_call_operand.vmem [shape: f32[20,9,18], index: 1, kind: input, shape index: {}]
  %s2 = inlined_call_operand.vmem [shape: f32[3,18,384], index: 2, kind: input, shape index: {}]
  %s3 = inlined_call_operand.vmem [shape: f32[1,384], index: 3, kind: input, shape index: {}]
  %s4 = inlined_call_operand.vmem [shape: f32[384,64], index: 4, kind: input, shape index: {}]
  %s5 = inlined_call_operand.vmem [shape: f32[1,64], index: 5, kind: input, shape index: {}]
  %s6 = inlined_call_operand.vmem [shape: f32[10,64,2], index: 6, kind: input, shape index: {}]
  %s7 = inlined_call_operand.vmem [shape: f32[1,2], index: 7, kind: input, shape index: {}]
  %s8 = inlined_call_operand.hbm [shape: f32[2,1,2], index: 8, kind: output, shape index: {}]
  %s9 = sld [smem:[#allocation0]]
  $region65: #{model_forward.1} parent=0
    _
  %s11 = ssub.s32 1, %s9
  %s12 = scalar_select 0, %s11, %s9
  $region1: #{model_forward.1} parent=0
    #allocation2 [shape = 'u8[1024]{0}', space=vmem, size = 0x400, scoped, tag = 'output window, operand 0']
    #allocation3 [shape = 's32[2]{0}', space=sflag, size = 0x8, scoped, tag = 'scoped memory for model_forward.1']
    %13 = vsyncpa [#allocation3], 0
    %s14 = scalar_lea.sflag [#allocation3], 1
    %15 = vsyncpa %s14, 0
    loop: start=0, step=1, limit=4
    $region2: #{model_forward.1} parent=1 // loop_pre_header
      _
    $region3: #{model_forward.1} parent=1 // loop_header
      %s17 = sphi 0, %s21
      %p18 = scmp.ge.s32.totalorder %s17, 4
      %s27 = sphi 0, %s29
      %s30 = sphi 0, %s27
      %s31 = sphi 0, %s30
      %s47 = sphi 0, %s31
      %s53 = sphi 0, %s55
      %s56 = sphi 0, %s53
      %s57 = sphi 0, %s56
      %s73 = sphi 0, %s57
      %s77 = sphi 0, %s77
      %s79 = sphi 0, %s77
      %s80 = sphi 0, %s79
      %s94 = sphi 0, %s80
      %s98 = sphi 0, %s98
      %s100 = sphi 0, %s98
      %s101 = sphi 0, %s100
      %s115 = sphi 0, %s101
      %s119 = sphi 0, %s119
      %s121 = sphi 0, %s119
      %s122 = sphi 0, %s121
      %s136 = sphi 0, %s122
      %s140 = sphi 0, %s140
      %s142 = sphi 0, %s140
      %s143 = sphi 0, %s142
      %s157 = sphi 0, %s143
      %s161 = sphi 0, %s161
      %s163 = sphi 0, %s161
      %s164 = sphi 0, %s163
      %s178 = sphi 0, %s164
      %s182 = sphi 0, %s182
      %s184 = sphi 0, %s182
      %s185 = sphi 0, %s184
      %s199 = sphi 0, %s185
      %s205 = sphi 0, %s207
      %s208 = sphi 0, %s205
      %s209 = sphi 0, %s208
      %s225 = sphi 0, %s209
    $region4: #{model_forward.1} parent=1 // loop_header_branch
      %20 = sbr.rel (%p18) target = $region8
    $region5: #{model_forward.1} parent=1 // loop_body
      %s22 = ssub.s32 %s17, 1
      %s23 = ssub.s32 %s17, 2
      %s24 = sadd.s32 %s17, 1
      %s25 = ssub.s32 %s17, %s24
      %p26 = scmp.eq.s32.totalorder %s25, 0
      %s28 = sadd.s32 %s27, 1
      %s29 = scalar_select %p26, %s27, %s28
      %p32 = pneg %p26
      %p33 = scmp.eq.s32.totalorder %s17, 1
      %p34 = por %p32, %p33
      %p35 = scmp.ne.s32.totalorder %s27, %s30
      %p36 = scmp.eq.s32.totalorder %s17, 0
      %p37 = por %p35, %p36
      %p38 = scmp.ne.s32.totalorder %s27, %s30
      %p39 = scmp.eq.s32.totalorder %s22, 1
      %p40 = por %p38, %p39
      %p41 = scmp.ne.s32.totalorder %s30, %s31
      %p42 = scmp.eq.s32.totalorder %s22, 0
      %p43 = por %p41, %p42
      %p44 = scmp.ne.s32.totalorder %s30, %s31
      %p45 = scmp.eq.s32.totalorder %s23, 1
      %p46 = por %p44, %p45
      %p48 = scmp.ne.s32.totalorder %s31, %s47
      %p49 = scmp.eq.s32.totalorder %s23, 0
      %p50 = por %p48, %p49
      %s51 = ssub.s32 %s17, %s24
      %p52 = scmp.eq.s32.totalorder %s51, 0
      %s54 = sadd.s32 %s53, 1
      %s55 = scalar_select %p52, %s53, %s54
      %p58 = pneg %p52
      %p59 = scmp.eq.s32.totalorder %s17, 1
      %p60 = por %p58, %p59
      %p61 = scmp.ne.s32.totalorder %s53, %s56
      %p62 = scmp.eq.s32.totalorder %s17, 0
      %p63 = por %p61, %p62
      %p64 = scmp.ne.s32.totalorder %s53, %s56
      %p65 = scmp.eq.s32.totalorder %s22, 1
      %p66 = por %p64, %p65
      %p67 = scmp.ne.s32.totalorder %s56, %s57
      %p68 = scmp.eq.s32.totalorder %s22, 0
      %p69 = por %p67, %p68
      %p70 = scmp.ne.s32.totalorder %s56, %s57
      %p71 = scmp.eq.s32.totalorder %s23, 1
      %p72 = por %p70, %p71
      %p74 = scmp.ne.s32.totalorder %s57, %s73
      %p75 = scmp.eq.s32.totalorder %s23, 0
      %p76 = por %p74, %p75
      %s78 = sadd.s32 %s77, 1
      %p81 = scmp.eq.s32.totalorder %s17, 1
      %p82 = scmp.ne.s32.totalorder %s77, %s79
      %p83 = scmp.eq.s32.totalorder %s17, 0
      %p84 = por %p82, %p83
      %p85 = scmp.ne.s32.totalorder %s77, %s79
      %p86 = scmp.eq.s32.totalorder %s22, 1
      %p87 = por %p85, %p86
      %p88 = scmp.ne.s32.totalorder %s79, %s80
      %p89 = scmp.eq.s32.totalorder %s22, 0
      %p90 = por %p88, %p89
      %p91 = scmp.ne.s32.totalorder %s79, %s80
      %p92 = scmp.eq.s32.totalorder %s23, 1
      %p93 = por %p91, %p92
      %p95 = scmp.ne.s32.totalorder %s80, %s94
      %p96 = scmp.eq.s32.totalorder %s23, 0
      %p97 = por %p95, %p96
      %s99 = sadd.s32 %s98, 1
      %p102 = scmp.eq.s32.totalorder %s17, 1
      %p103 = scmp.ne.s32.totalorder %s98, %s100
      %p104 = scmp.eq.s32.totalorder %s17, 0
      %p105 = por %p103, %p104
      %p106 = scmp.ne.s32.totalorder %s98, %s100
      %p107 = scmp.eq.s32.totalorder %s22, 1
      %p108 = por %p106, %p107
      %p109 = scmp.ne.s32.totalorder %s100, %s101
      %p110 = scmp.eq.s32.totalorder %s22, 0
      %p111 = por %p109, %p110
      %p112 = scmp.ne.s32.totalorder %s100, %s101
      %p113 = scmp.eq.s32.totalorder %s23, 1
      %p114 = por %p112, %p113
      %p116 = scmp.ne.s32.totalorder %s101, %s115
      %p117 = scmp.eq.s32.totalorder %s23, 0
      %p118 = por %p116, %p117
      %s120 = sadd.s32 %s119, 1
      %p123 = scmp.eq.s32.totalorder %s17, 1
      %p124 = scmp.ne.s32.totalorder %s119, %s121
      %p125 = scmp.eq.s32.totalorder %s17, 0
      %p126 = por %p124, %p125
      %p127 = scmp.ne.s32.totalorder %s119, %s121
      %p128 = scmp.eq.s32.totalorder %s22, 1
      %p129 = por %p127, %p128
      %p130 = scmp.ne.s32.totalorder %s121, %s122
      %p131 = scmp.eq.s32.totalorder %s22, 0
      %p132 = por %p130, %p131
      %p133 = scmp.ne.s32.totalorder %s121, %s122
      %p134 = scmp.eq.s32.totalorder %s23, 1
      %p135 = por %p133, %p134
      %p137 = scmp.ne.s32.totalorder %s122, %s136
      %p138 = scmp.eq.s32.totalorder %s23, 0
      %p139 = por %p137, %p138
      %s141 = sadd.s32 %s140, 1
      %p144 = scmp.eq.s32.totalorder %s17, 1
      %p145 = scmp.ne.s32.totalorder %s140, %s142
      %p146 = scmp.eq.s32.totalorder %s17, 0
      %p147 = por %p145, %p146
      %p148 = scmp.ne.s32.totalorder %s140, %s142
      %p149 = scmp.eq.s32.totalorder %s22, 1
      %p150 = por %p148, %p149
      %p151 = scmp.ne.s32.totalorder %s142, %s143
      %p152 = scmp.eq.s32.totalorder %s22, 0
      %p153 = por %p151, %p152
      %p154 = scmp.ne.s32.totalorder %s142, %s143
      %p155 = scmp.eq.s32.totalorder %s23, 1
      %p156 = por %p154, %p155
      %p158 = scmp.ne.s32.totalorder %s143, %s157
      %p159 = scmp.eq.s32.totalorder %s23, 0
      %p160 = por %p158, %p159
      %s162 = sadd.s32 %s161, 1
      %p165 = scmp.eq.s32.totalorder %s17, 1
      %p166 = scmp.ne.s32.totalorder %s161, %s163
      %p167 = scmp.eq.s32.totalorder %s17, 0
      %p168 = por %p166, %p167
      %p169 = scmp.ne.s32.totalorder %s161, %s163
      %p170 = scmp.eq.s32.totalorder %s22, 1
      %p171 = por %p169, %p170
      %p172 = scmp.ne.s32.totalorder %s163, %s164
      %p173 = scmp.eq.s32.totalorder %s22, 0
      %p174 = por %p172, %p173
      %p175 = scmp.ne.s32.totalorder %s163, %s164
      %p176 = scmp.eq.s32.totalorder %s23, 1
      %p177 = por %p175, %p176
      %p179 = scmp.ne.s32.totalorder %s164, %s178
      %p180 = scmp.eq.s32.totalorder %s23, 0
      %p181 = por %p179, %p180
      %s183 = sadd.s32 %s182, 1
      %p186 = scmp.eq.s32.totalorder %s17, 1
      %p187 = scmp.ne.s32.totalorder %s182, %s184
      %p188 = scmp.eq.s32.totalorder %s17, 0
      %p189 = por %p187, %p188
      %p190 = scmp.ne.s32.totalorder %s182, %s184
      %p191 = scmp.eq.s32.totalorder %s22, 1
      %p192 = por %p190, %p191
      %p193 = scmp.ne.s32.totalorder %s184, %s185
      %p194 = scmp.eq.s32.totalorder %s22, 0
      %p195 = por %p193, %p194
      %p196 = scmp.ne.s32.totalorder %s184, %s185
      %p197 = scmp.eq.s32.totalorder %s23, 1
      %p198 = por %p196, %p197
      %p200 = scmp.ne.s32.totalorder %s185, %s199
      %p201 = scmp.eq.s32.totalorder %s23, 0
      %p202 = por %p200, %p201
      %s203 = ssub.s32 %s17, %s24
      %p204 = scmp.eq.s32.totalorder %s203, 0
      %s206 = sadd.s32 %s205, 1
      %s207 = scalar_select %p204, %s205, %s206
      %p210 = pneg %p204
      %p211 = scmp.eq.s32.totalorder %s17, 1
      %p212 = por %p210, %p211
      %p213 = scmp.ne.s32.totalorder %s205, %s208
      %p214 = scmp.eq.s32.totalorder %s17, 0
      %p215 = por %p213, %p214
      %p216 = scmp.ne.s32.totalorder %s205, %s208
      %p217 = scmp.eq.s32.totalorder %s22, 1
      %p218 = por %p216, %p217
      %p219 = scmp.ne.s32.totalorder %s208, %s209
      %p220 = scmp.eq.s32.totalorder %s22, 0
      %p221 = por %p219, %p220
      %p222 = scmp.ne.s32.totalorder %s208, %s209
      %p223 = scmp.eq.s32.totalorder %s23, 1
      %p224 = por %p222, %p223
      %p226 = scmp.ne.s32.totalorder %s209, %s225
      %p227 = scmp.eq.s32.totalorder %s23, 0
      %p228 = por %p226, %p227
      %p229 = scmp.le.s32.totalorder 1, %s17
      %p230 = scmp.lt.s32.totalorder %s17, 3
      %p231 = pnand %p229, %p230
      %p232 = pneg %p231
      // Predicated region
      $region9: #{model_forward.1} parent=5 // pred_check
        _
      $region10: #{model_forward.1} parent=5 // pred_check_branch
        %234 = sbr.rel (%p231) target = $region12
      $region11: #{model_forward.1} parent=5 // pred_region
        %s235 = ssub.s32 %s17, 1
        // Predicated region
        $region13: #{model_forward.1} parent=11 // pred_check
          %p236 = pneg %p90
        $region14: #{model_forward.1} parent=11 // pred_check_branch
          %238 = sbr.rel (%p236) target = $region16
        $region15: #{model_forward.1} parent=11 // pred_region
          _
        $region16: #{model_forward.1} parent=11 // pred_fallthru
          _
        // Predicated region
        $region17: #{model_forward.1} parent=11 // pred_check
          %p239 = pneg %p111
        $region18: #{model_forward.1} parent=11 // pred_check_branch
          %241 = sbr.rel (%p239) target = $region20
        $region19: #{model_forward.1} parent=11 // pred_region
          _
        $region20: #{model_forward.1} parent=11 // pred_fallthru
          _
        // Predicated region
        $region21: #{model_forward.1} parent=11 // pred_check
          %p242 = pneg %p132
        $region22: #{model_forward.1} parent=11 // pred_check_branch
          %244 = sbr.rel (%p242) target = $region24
        $region23: #{model_forward.1} parent=11 // pred_region
          _
        $region24: #{model_forward.1} parent=11 // pred_fallthru
          _
        // Predicated region
        $region25: #{model_forward.1} parent=11 // pred_check
          %p245 = pneg %p153
        $region26: #{model_forward.1} parent=11 // pred_check_branch
          %247 = sbr.rel (%p245) target = $region28
        $region27: #{model_forward.1} parent=11 // pred_region
          _
        $region28: #{model_forward.1} parent=11 // pred_fallthru
          _
        // Predicated region
        $region29: #{model_forward.1} parent=11 // pred_check
          %p248 = pneg %p174
        $region30: #{model_forward.1} parent=11 // pred_check_branch
          %250 = sbr.rel (%p248) target = $region32
        $region31: #{model_forward.1} parent=11 // pred_region
          _
        $region32: #{model_forward.1} parent=11 // pred_fallthru
          _
        // Predicated region
        $region33: #{model_forward.1} parent=11 // pred_check
          %p251 = pneg %p195
        $region34: #{model_forward.1} parent=11 // pred_check_branch
          %253 = sbr.rel (%p251) target = $region36
        $region35: #{model_forward.1} parent=11 // pred_region
          _
        $region36: #{model_forward.1} parent=11 // pred_fallthru
          _
      $region12: #{model_forward.1} parent=5 // pred_fallthru
        _
      %p254 = scmp.lt.s32.totalorder %s17, 2
      // Predicated region
      $region37: #{model_forward.1} parent=5 // pred_check
        %p255 = pneg %p254
      $region38: #{model_forward.1} parent=5 // pred_check_branch
        %257 = sbr.rel (%p255) target = $region40
      $region39: #{model_forward.1} parent=5 // pred_region
        // Predicated region
        $region41: #{model_forward.1} parent=39 // pred_check
          %p258 = pneg %p37
        $region42: #{model_forward.1} parent=39 // pred_check_branch
          %260 = sbr.rel (%p258) target = $region44
        $region43: #{model_forward.1} parent=39 // pred_region
          %s261 = smul.u32 10, %s17
          %p262 = scmp.lt.s32.totalorder %s261, 19
          %s263 = scalar_select %p262, %s261, 19
          %s264 = smul.addr %s263, 2
          %s265 = smul.addr %s264, 8
          %s266 = scalar_lea.vmem %s0, %s265
          %s267 = smul.u32 10, %s17
        $region44: #{model_forward.1} parent=39 // pred_fallthru
          _
        // Predicated region
        $region45: #{model_forward.1} parent=39 // pred_check
          %p268 = pneg %p63
        $region46: #{model_forward.1} parent=39 // pred_check_branch
          %270 = sbr.rel (%p268) target = $region48
        $region47: #{model_forward.1} parent=39 // pred_region
          %s271 = smul.u32 10, %s17
          %p272 = scmp.lt.s32.totalorder %s271, 19
          %s273 = scalar_select %p272, %s271, 19
          %s274 = smul.addr %s273, 2
          %s275 = smul.addr %s274, 8
          %s276 = scalar_lea.vmem %s1, %s275
          %s277 = smul.u32 10, %s17
        $region48: #{model_forward.1} parent=39 // pred_fallthru
          _
      $region40: #{model_forward.1} parent=5 // pred_fallthru
        _
      %p278 = scmp.le.s32.totalorder 1, %s17
      %p279 = scmp.lt.s32.totalorder %s17, 3
      %p280 = pnand %p278, %p279
      %p281 = pneg %p280
      // Predicated region
      $region49: #{model_forward.1} parent=5 // pred_check
        _
      $region50: #{model_forward.1} parent=5 // pred_check_branch
        %283 = sbr.rel (%p280) target = $region52
      $region51: #{model_forward.1} parent=5 // pred_region
        %s284 = ssub.s32 %s17, 1
        %s285 = smul.u32 10, %s22
        %p286 = scmp.lt.s32.totalorder %s285, 19
        %s287 = scalar_select %p286, %s285, 19
        %s288 = smul.addr %s287, 2
        %s289 = smul.addr %s288, 8
        %s290 = scalar_lea.vmem %s0, %s289
        %p291 = pneg %p43
        %p292 = pneg %p40
        %s293 = smul.u32 10, %s22
        %p294 = scmp.lt.s32.totalorder %s293, 19
        %s295 = scalar_select %p294, %s293, 19
        %s296 = smul.addr %s295, 2
        %s297 = smul.addr %s296, 8
        %s298 = scalar_lea.vmem %s1, %s297
        %p299 = pneg %p69
        %p300 = pneg %p66
        %p301 = pneg %p90
        %p302 = pneg %p87
        %p303 = pneg %p111
        %p304 = pneg %p108
        %p305 = pneg %p132
        %p306 = pneg %p129
        %p307 = pneg %p153
        %p308 = pneg %p150
        %p309 = pneg %p174
        %p310 = pneg %p171
        %p311 = pneg %p195
        %p312 = pneg %p192
        %p313 = pneg %p221
        %p314 = pneg %p218
        %s315 = sand.u32 %s208, 1
        %s316 = scalar_lea.sflag [#allocation3], %s315
        %s317 = sand.u32 %s208, 1
        %s318 = scalar_lea.vmem [#allocation2], %s317
        %s319 = smul.u32 10, %s22
        %p320 = scmp.lt.s32.totalorder %s319, 19
        %s321 = scalar_select %p320, %s319, 19
        %s322 = smul.addr %s321, 2
        %s323 = smul.addr %s322, 8
        %s324 = scalar_lea.vmem %s0, %s323
        %s325 = smul.u32 10, %s22
        %s326 = smul.u32 10, %s22
        %p327 = scmp.lt.s32.totalorder %s326, 19
        %s328 = scalar_select %p327, %s326, 19
        %s329 = smul.addr %s328, 2
        %s330 = smul.addr %s329, 8
        %s331 = scalar_lea.vmem %s1, %s330
        %s332 = smul.u32 10, %s22
        %v333 = vld [vmem:[%s324] sm:$0xff]
        %v334 = vld [vmem:[%s324 + $0x8] sm:$0x1]
        %v335 = vld [vmem:[%s324 + $0x10] sm:$0xff]
        %v336 = vld [vmem:[%s324 + $0x18] sm:$0x1]
        %v337 = vld [vmem:[%s324 + $0x20] sm:$0xff]
        %v338 = vld [vmem:[%s324 + $0x28] sm:$0x1]
        %v339 = vld [vmem:[%s324 + $0x30] sm:$0xff]
        %v340 = vld [vmem:[%s324 + $0x38] sm:$0x1]
        %v341 = vld [vmem:[%s324 + $0x40] sm:$0xff]
        %v342 = vld [vmem:[%s324 + $0x48] sm:$0x1]
        %v343 = vld [vmem:[%s324 + $0x50] sm:$0xff]
        %v344 = vld [vmem:[%s324 + $0x58] sm:$0x1]
        %v345 = vld [vmem:[%s324 + $0x60] sm:$0xff]
        %v346 = vld [vmem:[%s324 + $0x68] sm:$0x1]
        %v347 = vld [vmem:[%s324 + $0x70] sm:$0xff]
        %v348 = vld [vmem:[%s324 + $0x78] sm:$0x1]
        %v349 = vld [vmem:[%s324 + $0x80] sm:$0xff]
        %v350 = vld [vmem:[%s324 + $0x88] sm:$0x1]
        %v351 = vld [vmem:[%s324 + $0x90] sm:$0xff]
        %v352 = vld [vmem:[%s324 + $0x98] sm:$0x1]
        %v353 = vld [vmem:[%s331] sm:$0xff]
        %v354 = vld [vmem:[%s331 + $0x10] sm:$0xff]
        %v355 = vld [vmem:[%s331 + $0x20] sm:$0xff]
        %v356 = vld [vmem:[%s331 + $0x30] sm:$0xff]
        %v357 = vld [vmem:[%s331 + $0x40] sm:$0xff]
        %v358 = vld [vmem:[%s331 + $0x50] sm:$0xff]
        %v359 = vld [vmem:[%s331 + $0x60] sm:$0xff]
        %v360 = vld [vmem:[%s331 + $0x70] sm:$0xff]
        %v361 = vld [vmem:[%s331 + $0x80] sm:$0xff]
        %v362 = vld [vmem:[%s331 + $0x90] sm:$0xff]
        %vm383 = vcmask 1046528
        %v384 = vrot.slane %v333, 1
        %v385 = vrot.slane %v334, 1
        %v386 = vsel %vm383, %v384, %v385
        %v387 = vrot.slane %v335, 1
        %v388 = vrot.slane %v336, 1
        %v389 = vsel %vm383, %v387, %v388
        %v390 = vrot.slane %v337, 1
        %v391 = vrot.slane %v338, 1
        %v392 = vsel %vm383, %v390, %v391
        %v393 = vrot.slane %v339, 1
        %v394 = vrot.slane %v340, 1
        %v395 = vsel %vm383, %v393, %v394
        %v396 = vrot.slane %v341, 1
        %v397 = vrot.slane %v342, 1
        %v398 = vsel %vm383, %v396, %v397
        %v399 = vrot.slane %v343, 1
        %v400 = vrot.slane %v344, 1
        %v401 = vsel %vm383, %v399, %v400
        %v402 = vrot.slane %v345, 1
        %v403 = vrot.slane %v346, 1
        %v404 = vsel %vm383, %v402, %v403
        %v405 = vrot.slane %v347, 1
        %v406 = vrot.slane %v348, 1
        %v407 = vsel %vm383, %v405, %v406
        %v408 = vrot.slane %v349, 1
        %v409 = vrot.slane %v350, 1
        %v410 = vsel %vm383, %v408, %v409
        %v411 = vrot.slane %v351, 1
        %v412 = vrot.slane %v352, 1
        %v413 = vsel %vm383, %v411, %v412
        %v414 = vld [vmem:[%s2] sm:$0xff]
        %v415 = vld [vmem:[%s2 + $0x8] sm:$0xff]
        %v416 = vld [vmem:[%s2 + $0x10] sm:$0xff]
        %v417 = vld [vmem:[%s2 + $0x18] sm:$0xff]
        %v418 = vld [vmem:[%s2 + $0x20] sm:$0xff]
        %v419 = vld [vmem:[%s2 + $0x28] sm:$0xff]
        %v420 = vld [vmem:[%s2 + $0x30] sm:$0x3]
        %v421 = vld [vmem:[%s2 + $0x38] sm:$0x3]
        %v422 = vld [vmem:[%s2 + $0x40] sm:$0x3]
        %s423 = scalar_lea.vmem %s2, 72
        %v424 = vld [vmem:[%s423] sm:$0xff]
        %v425 = vld [vmem:[%s423 + $0x8] sm:$0xff]
        %v426 = vld [vmem:[%s423 + $0x10] sm:$0xff]
        %v427 = vld [vmem:[%s423 + $0x18] sm:$0xff]
        %v428 = vld [vmem:[%s423 + $0x20] sm:$0xff]
        %v429 = vld [vmem:[%s423 + $0x28] sm:$0xff]
        %v430 = vld [vmem:[%s423 + $0x30] sm:$0x3]
        %v431 = vld [vmem:[%s423 + $0x38] sm:$0x3]
        %v432 = vld [vmem:[%s423 + $0x40] sm:$0x3]
        %vm433 = vcmask 146432
        %v435 = vsel %vm433, %v353, 0
        %v438 = vsel %vm433, %v354, 0
        %v441 = vsel %vm433, %v355, 0
        %v444 = vsel %vm433, %v356, 0
        %v447 = vsel %vm433, %v357, 0
        %v450 = vsel %vm433, %v358, 0
        %v453 = vsel %vm433, %v359, 0
        %v456 = vsel %vm433, %v360, 0
        %v459 = vsel %vm433, %v361, 0
        %v462 = vsel %vm433, %v362, 0
        %vm464 = vcmask 1041408
        %v466 = vsel %vm464, %v430, 0
        %v469 = vsel %vm464, %v431, 0
        %v472 = vsel %vm464, %v432, 0
        %474 = vmatprep.subr.mxu0 %v425
        %475 = vmatpush1.msra.mxu0 %v424
        %476 = vmatprep.subr.mxu0 %v428
        %477 = vmatpush1.msra.mxu0 %v427
        %478 = vmatprep.subr.mxu0 %v469
        %479 = vmatpush1.msra.mxu0 %v466
        %480 = vmatprep.subr.mxu0 0.0
        %481 = vmatpush1.msra.mxu0 0.0
        %482 = vmatprep.subr.mxu0 0.0
        %483 = vmatpush1.msra.mxu0 0.0
        %484 = vmatprep.subr.mxu0 0.0
        %485 = vmatpush1.msra.mxu0 0.0
        %486 = vmatprep.subr.mxu0 0.0
        %487 = vmatpush1.msra.mxu0 0.0
        %488 = vmatprep.subr.mxu0 0.0
        %489 = vmatpush1.msra.mxu0 0.0
        %490 = vmatprep.subr.mxu0 0.0
        %491 = vmatpush1.msra.mxu0 0.0
        %492 = vmatprep.subr.mxu0 0.0
        %493 = vmatpush1.msra.mxu0 0.0
        %494 = vmatprep.subr.mxu0 0.0
        %495 = vmatpush1.msra.mxu0 0.0
        %496 = vmatprep.subr.mxu0 0.0
        %497 = vmatpush1.msra.mxu0 0.0
        %498 = vmatprep.subr.mxu0 0.0
        %499 = vmatpush1.msra.mxu0 0.0
        %500 = vmatprep.subr.mxu0 0.0
        %501 = vmatpush1.msra.mxu0 0.0
        %502 = vmatprep.subr.mxu0 0.0
        %503 = vmatpush1.msra.mxu0 0.0
        %504 = vmatprep.subr.mxu0 0.0
        %505 = vmatpush1.msra.mxu0 0.0
        %506 = vmatprep.subr.mxu0 0.0
        %507 = vmatpush1.msra.mxu0 0.0
        %508 = vmatprep.subr.mxu0 0.0
        %509 = vmatpush1.msra.mxu0 0.0
        %510 = vmatprep.subr.mxu0 0.0
        %511 = vmatpush1.msra.mxu0 0.0
        %512 = vmatprep.subr.mxu0 0.0
        %513 = vmatpush1.msra.mxu0 0.0
        %514 = vmatprep.subr.mxu0 0.0
        %515 = vmatpush1.msra.mxu0 0.0
        %516 = vmatprep.subr.mxu0 0.0
        %517 = vmatpush1.msra.mxu0 0.0
        %518 = vmatprep.subr.mxu0 0.0
        %519 = vmatpush1.msra.mxu0 0.0
        %520 = vmatprep.subr.mxu0 0.0
        %521 = vmatpush1.msra.mxu0 0.0
        %522 = vmatprep.subr.mxu0 0.0
        %523 = vmatpush1.msra.mxu0 0.0
        %524 = vmatprep.subr.mxu0 0.0
        %525 = vmatpush1.msra.mxu0 0.0
        %526 = vmatprep.subr.mxu0 0.0
        %527 = vmatpush1.msra.mxu0 0.0
        %528 = vmatprep.subr.mxu0 0.0
        %529 = vmatpush1.msra.mxu0 0.0
        %530 = vmatprep.subr.mxu0 0.0
        %531 = vmatpush1.msra.mxu0 0.0
        %532 = vmatprep.subr.mxu0 0.0
        %533 = vmatpush1.msra.mxu0 0.0
        %534 = vmatprep.subr.mxu0 0.0
        %535 = vmatpush1.msra.mxu0 0.0
        %536 = vmatprep.subr.mxu0 0.0
        %537 = vmatpush1.msra.mxu0 0.0
        %538 = vmatprep.mubr.f32.mxu0 0.0
        %539 = vmatmul.mubr.f32.gmra.mrb[0].mxu0 %v435
        %v540 = vpop.f32.mrb[0].mxu0
        %v541 = vadd.f32 0.0, %v540
        %v542 = vpop.f32.mrb[0].mxu0
        %v543 = vadd.f32 0.0, %v542
        %544 = vmatprep.mubr.f32.mxu0 0.0
        %545 = vmatmul.mubr.f32.gmra.mrb[0].mxu0 %v438
        %v546 = vpop.f32.mrb[0].mxu0
        %v547 = vadd.f32 0.0, %v546
        %v548 = vpop.f32.mrb[0].mxu0
        %v549 = vadd.f32 0.0, %v548
        %550 = vmatprep.mubr.f32.mxu0 0.0
        %551 = vmatmul.mubr.f32.gmra.mrb[0].mxu0 %v441
        %v552 = vpop.f32.mrb[0].mxu0
        %v553 = vadd.f32 0.0, %v552
        %v554 = vpop.f32.mrb[0].mxu0
        %v555 = vadd.f32 0.0, %v554
        %556 = vmatprep.mubr.f32.mxu0 0.0
        %557 = vmatmul.mubr.f32.gmra.mrb[0].mxu0 %v444
        %v558 = vpop.f32.mrb[0].mxu0
        %v559 = vadd.f32 0.0, %v558
        %v560 = vpop.f32.mrb[0].mxu0
        %v561 = vadd.f32 0.0, %v560
        %562 = vmatprep.mubr.f32.mxu0 0.0
        %563 = vmatmul.mubr.f32.gmra.mrb[0].mxu0 %v447
        %v564 = vpop.f32.mrb[0].mxu0
        %v565 = vadd.f32 0.0, %v564
        %v566 = vpop.f32.mrb[0].mxu0
        %v567 = vadd.f32 0.0, %v566
        %568 = vmatprep.mubr.f32.mxu0 0.0
        %569 = vmatmul.mubr.f32.gmra.mrb[0].mxu0 %v450
        %v570 = vpop.f32.mrb[0].mxu0
        %v571 = vadd.f32 0.0, %v570
        %v572 = vpop.f32.mrb[0].mxu0
        %v573 = vadd.f32 0.0, %v572
        %574 = vmatprep.mubr.f32.mxu0 0.0
        %575 = vmatmul.mubr.f32.gmra.mrb[0].mxu0 %v453
        %v576 = vpop.f32.mrb[0].mxu0
        %v577 = vadd.f32 0.0, %v576
        %v578 = vpop.f32.mrb[0].mxu0
        %v579 = vadd.f32 0.0, %v578
        %580 = vmatprep.mubr.f32.mxu0 0.0
        %581 = vmatmul.mubr.f32.gmra.mrb[0].mxu0 %v456
        %v582 = vpop.f32.mrb[0].mxu0
        %v583 = vadd.f32 0.0, %v582
        %v584 = vpop.f32.mrb[0].mxu0
        %v585 = vadd.f32 0.0, %v584
        %586 = vmatprep.mubr.f32.mxu0 0.0
        %587 = vmatmul.mubr.f32.gmra.mrb[0].mxu0 %v459
        %v588 = vpop.f32.mrb[0].mxu0
        %v589 = vadd.f32 0.0, %v588
        %v590 = vpop.f32.mrb[0].mxu0
        %v591 = vadd.f32 0.0, %v590
        %592 = vmatprep.mubr.f32.mxu0 0.0
        %593 = vmatmul.mubr.f32.gmra.mrb[0].mxu0 %v462
        %v594 = vpop.f32.mrb[0].mxu0
        %v595 = vadd.f32 0.0, %v594
        %v596 = vpop.f32.mrb[0].mxu0
        %v597 = vadd.f32 0.0, %v596
        %598 = vdwg.mxu0
        %599 = vmatprep.subr.mxu0 0.0
        %600 = vmatpush1.msra.mxu0 %v426
        %601 = vmatprep.subr.mxu0 0.0
        %602 = vmatpush1.msra.mxu0 %v429
        %603 = vmatprep.subr.mxu0 0.0
        %604 = vmatpush1.msra.mxu0 %v472
        %605 = vmatprep.subr.mxu0 0.0
        %606 = vmatpush1.msra.mxu0 0.0
        %607 = vmatprep.subr.mxu0 0.0
        %608 = vmatpush1.msra.mxu0 0.0
        %609 = vmatprep.subr.mxu0 0.0
        %610 = vmatpush1.msra.mxu0 0.0
        %611 = vmatprep.subr.mxu0 0.0
        %612 = vmatpush1.msra.mxu0 0.0
        %613 = vmatprep.subr.mxu0 0.0
        %614 = vmatpush1.msra.mxu0 0.0
        %615 = vmatprep.subr.mxu0 0.0
        %616 = vmatpush1.msra.mxu0 0.0
        %617 = vmatprep.subr.mxu0 0.0
        %618 = vmatpush1.msra.mxu0 0.0
        %619 = vmatprep.subr.mxu0 0.0
        %620 = vmatpush1.msra.mxu0 0.0
        %621 = vmatprep.subr.mxu0 0.0
        %622 = vmatpush1.msra.mxu0 0.0
        %623 = vmatprep.subr.mxu0 0.0
        %624 = vmatpush1.msra.mxu0 0.0
        %625 = vmatprep.subr.mxu0 0.0
        %626 = vmatpush1.msra.mxu0 0.0
        %627 = vmatprep.subr.mxu0 0.0
        %628 = vmatpush1.msra.mxu0 0.0
        %629 = vmatprep.subr.mxu0 0.0
        %630 = vmatpush1.msra.mxu0 0.0
        %631 = vmatprep.subr.mxu0 0.0
        %632 = vmatpush1.msra.mxu0 0.0
        %633 = vmatprep.subr.mxu0 0.0
        %634 = vmatpush1.msra.mxu0 0.0
        %635 = vmatprep.subr.mxu0 0.0
        %636 = vmatpush1.msra.mxu0 0.0
        %637 = vmatprep.subr.mxu0 0.0
        %638 = vmatpush1.msra.mxu0 0.0
        %639 = vmatprep.subr.mxu0 0.0
        %640 = vmatpush1.msra.mxu0 0.0
        %641 = vmatprep.subr.mxu0 0.0
        %642 = vmatpush1.msra.mxu0 0.0
        %643 = vmatprep.subr.mxu0 0.0
        %644 = vmatpush1.msra.mxu0 0.0
        %645 = vmatprep.subr.mxu0 0.0
        %646 = vmatpush1.msra.mxu0 0.0
        %647 = vmatprep.subr.mxu0 0.0
        %648 = vmatpush1.msra.mxu0 0.0
        %649 = vmatprep.subr.mxu0 0.0
        %650 = vmatpush1.msra.mxu0 0.0
        %651 = vmatprep.subr.mxu0 0.0
        %652 = vmatpush1.msra.mxu0 0.0
        %653 = vmatprep.subr.mxu0 0.0
        %654 = vmatpush1.msra.mxu0 0.0
        %655 = vmatprep.subr.mxu0 0.0
        %656 = vmatpush1.msra.mxu0 0.0
        %657 = vmatprep.subr.mxu0 0.0
        %658 = vmatpush1.msra.mxu0 0.0
        %659 = vmatprep.subr.mxu0 0.0
        %660 = vmatpush1.msra.mxu0 0.0
        %661 = vmatprep.subr.mxu0 0.0
        %662 = vmatpush1.msra.mxu0 0.0
        %663 = vmatprep.mubr.f32.mxu0 0.0
        %664 = vmatmul.mubr.f32.gmra.mrb[0].mxu0 %v435
        %v665 = vpop.f32.mrb[0].mxu0
        %v666 = vadd.f32 0.0, %v665
        %v667 = vpop.f32.mrb[0].mxu0
        %668 = vmatprep.mubr.f32.mxu0 0.0
        %669 = vmatmul.mubr.f32.gmra.mrb[0].mxu0 %v438
        %v670 = vpop.f32.mrb[0].mxu0
        %v671 = vadd.f32 0.0, %v670
        %v672 = vpop.f32.mrb[0].mxu0
        %673 = vmatprep.mubr.f32.mxu0 0.0
        %674 = vmatmul.mubr.f32.gmra.mrb[0].mxu0 %v441
        %v675 = vpop.f32.mrb[0].mxu0
        %v676 = vadd.f32 0.0, %v675
        %v677 = vpop.f32.mrb[0].mxu0
        %678 = vmatprep.mubr.f32.mxu0 0.0
        %679 = vmatmul.mubr.f32.gmra.mrb[0].mxu0 %v444
        %v680 = vpop.f32.mrb[0].mxu0
        %v681 = vadd.f32 0.0, %v680
        %v682 = vpop.f32.mrb[0].mxu0
        %683 = vmatprep.mubr.f32.mxu0 0.0
        %684 = vmatmul.mubr.f32.gmra.mrb[0].mxu0 %v447
        %v685 = vpop.f32.mrb[0].mxu0
        %v686 = vadd.f32 0.0, %v685
        %v687 = vpop.f32.mrb[0].mxu0
        %688 = vmatprep.mubr.f32.mxu0 0.0
        %689 = vmatmul.mubr.f32.gmra.mrb[0].mxu0 %v450
        %v690 = vpop.f32.mrb[0].mxu0
        %v691 = vadd.f32 0.0, %v690
        %v692 = vpop.f32.mrb[0].mxu0
        %693 = vmatprep.mubr.f32.mxu0 0.0
        %694 = vmatmul.mubr.f32.gmra.mrb[0].mxu0 %v453
        %v695 = vpop.f32.mrb[0].mxu0
        %v696 = vadd.f32 0.0, %v695
        %v697 = vpop.f32.mrb[0].mxu0
        %698 = vmatprep.mubr.f32.mxu0 0.0
        %699 = vmatmul.mubr.f32.gmra.mrb[0].mxu0 %v456
        %v700 = vpop.f32.mrb[0].mxu0
        %v701 = vadd.f32 0.0, %v700
        %v702 = vpop.f32.mrb[0].mxu0
        %703 = vmatprep.mubr.f32.mxu0 0.0
        %704 = vmatmul.mubr.f32.gmra.mrb[0].mxu0 %v459
        %v705 = vpop.f32.mrb[0].mxu0
        %v706 = vadd.f32 0.0, %v705
        %v707 = vpop.f32.mrb[0].mxu0
        %708 = vmatprep.mubr.f32.mxu0 0.0
        %709 = vmatmul.mubr.f32.gmra.mrb[0].mxu0 %v462
        %v710 = vpop.f32.mrb[0].mxu0
        %v711 = vadd.f32 0.0, %v710
        %v712 = vpop.f32.mrb[0].mxu0
        %713 = vdwg.mxu0
        %v714 = vsel %vm433, %v333, 0
        %v716 = vsel %vm433, %v335, 0
        %v718 = vsel %vm433, %v337, 0
        %v720 = vsel %vm433, %v339, 0
        %v722 = vsel %vm433, %v341, 0
        %v724 = vsel %vm433, %v343, 0
        %v726 = vsel %vm433, %v345, 0
        %v728 = vsel %vm433, %v347, 0
        %v730 = vsel %vm433, %v349, 0
        %v732 = vsel %vm433, %v351, 0
        %v735 = vsel %vm464, %v420, 0
        %v738 = vsel %vm464, %v421, 0
        %v741 = vsel %vm464, %v422, 0
        %743 = vmatprep.subr.mxu0 %v415
        %744 = vmatpush1.msra.mxu0 %v414
        %745 = vmatprep.subr.mxu0 %v418
        %746 = vmatpush1.msra.mxu0 %v417
        %747 = vmatprep.subr.mxu0 %v738
        %748 = vmatpush1.msra.mxu0 %v735
        %749 = vmatprep.subr.mxu0 0.0
        %750 = vmatpush1.msra.mxu0 0.0
        %751 = vmatprep.subr.mxu0 0.0
        %752 = vmatpush1.msra.mxu0 0.0
        %753 = vmatprep.subr.mxu0 0.0
        %754 = vmatpush1.msra.mxu0 0.0
        %755 = vmatprep.subr.mxu0 0.0
        %756 = vmatpush1.msra.mxu0 0.0
        %757 = vmatprep.subr.mxu0 0.0
        %758 = vmatpush1.msra.mxu0 0.0
        %759 = vmatprep.subr.mxu0 0.0
        %760 = vmatpush1.msra.mxu0 0.0
        %761 = vmatprep.subr.mxu0 0.0
        %762 = vmatpush1.msra.mxu0 0.0
        %763 = vmatprep.subr.mxu0 0.0
        %764 = vmatpush1.msra.mxu0 0.0
        %765 = vmatprep.subr.mxu0 0.0
        %766 = vmatpush1.msra.mxu0 0.0
        %767 = vmatprep.subr.mxu0 0.0
        %768 = vmatpush1.msra.mxu0 0.0
        %769 = vmatprep.subr.mxu0 0.0
        %770 = vmatpush1.msra.mxu0 0.0
        %771 = vmatprep.subr.mxu0 0.0
        %772 = vmatpush1.msra.mxu0 0.0
        %773 = vmatprep.subr.mxu0 0.0
        %774 = vmatpush1.msra.mxu0 0.0
        %775 = vmatprep.subr.mxu0 0.0
        %776 = vmatpush1.msra.mxu0 0.0
        %777 = vmatprep.subr.mxu0 0.0
        %778 = vmatpush1.msra.mxu0 0.0
        %779 = vmatprep.subr.mxu0 0.0
        %780 = vmatpush1.msra.mxu0 0.0
        %781 = vmatprep.subr.mxu0 0.0
        %782 = vmatpush1.msra.mxu0 0.0
        %783 = vmatprep.subr.mxu0 0.0
        %784 = vmatpush1.msra.mxu0 0.0
        %785 = vmatprep.subr.mxu0 0.0
        %786 = vmatpush1.msra.mxu0 0.0
        %787 = vmatprep.subr.mxu0 0.0
        %788 = vmatpush1.msra.mxu0 0.0
        %789 = vmatprep.subr.mxu0 0.0
        %790 = vmatpush1.msra.mxu0 0.0
        %791 = vmatprep.subr.mxu0 0.0
        %792 = vmatpush1.msra.mxu0 0.0
        %793 = vmatprep.subr.mxu0 0.0
        %794 = vmatpush1.msra.mxu0 0.0
        %795 = vmatprep.subr.mxu0 0.0
        %796 = vmatpush1.msra.mxu0 0.0
        %797 = vmatprep.subr.mxu0 0.0
        %798 = vmatpush1.msra.mxu0 0.0
        %799 = vmatprep.subr.mxu0 0.0
        %800 = vmatpush1.msra.mxu0 0.0
        %801 = vmatprep.subr.mxu0 0.0
        %802 = vmatpush1.msra.mxu0 0.0
        %803 = vmatprep.subr.mxu0 0.0
        %804 = vmatpush1.msra.mxu0 0.0
        %805 = vmatprep.subr.mxu0 0.0
        %806 = vmatpush1.msra.mxu0 0.0
        %807 = vmatprep.mubr.f32.mxu0 0.0
        %808 = vmatmul.mubr.f32.gmra.mrb[0].mxu0 %v714
        %v809 = vpop.f32.mrb[0].mxu0
        %v810 = vadd.f32 %v541, %v809
        %v811 = vpop.f32.mrb[0].mxu0
        %v812 = vadd.f32 %v543, %v811
        %813 = vmatprep.mubr.f32.mxu0 0.0
        %814 = vmatmul.mubr.f32.gmra.mrb[0].mxu0 %v716
        %v815 = vpop.f32.mrb[0].mxu0
        %v816 = vadd.f32 %v547, %v815
        %v817 = vpop.f32.mrb[0].mxu0
        %v818 = vadd.f32 %v549, %v817
        %819 = vmatprep.mubr.f32.mxu0 0.0
        %820 = vmatmul.mubr.f32.gmra.mrb[0].mxu0 %v718
        %v821 = vpop.f32.mrb[0].mxu0
        %v822 = vadd.f32 %v553, %v821
        %v823 = vpop.f32.mrb[0].mxu0
        %v824 = vadd.f32 %v555, %v823
        %825 = vmatprep.mubr.f32.mxu0 0.0
        %826 = vmatmul.mubr.f32.gmra.mrb[0].mxu0 %v720
        %v827 = vpop.f32.mrb[0].mxu0
        %v828 = vadd.f32 %v559, %v827
        %v829 = vpop.f32.mrb[0].mxu0
        %v830 = vadd.f32 %v561, %v829
        %831 = vmatprep.mubr.f32.mxu0 0.0
        %832 = vmatmul.mubr.f32.gmra.mrb[0].mxu0 %v722
        %v833 = vpop.f32.mrb[0].mxu0
        %v834 = vadd.f32 %v565, %v833
        %v835 = vpop.f32.mrb[0].mxu0
        %v836 = vadd.f32 %v567, %v835
        %837 = vmatprep.mubr.f32.mxu0 0.0
        %838 = vmatmul.mubr.f32.gmra.mrb[0].mxu0 %v724
        %v839 = vpop.f32.mrb[0].mxu0
        %v840 = vadd.f32 %v571, %v839
        %v841 = vpop.f32.mrb[0].mxu0
        %v842 = vadd.f32 %v573, %v841
        %843 = vmatprep.mubr.f32.mxu0 0.0
        %844 = vmatmul.mubr.f32.gmra.mrb[0].mxu0 %v726
        %v845 = vpop.f32.mrb[0].mxu0
        %v846 = vadd.f32 %v577, %v845
        %v847 = vpop.f32.mrb[0].mxu0
        %v848 = vadd.f32 %v579, %v847
        %849 = vmatprep.mubr.f32.mxu0 0.0
        %850 = vmatmul.mubr.f32.gmra.mrb[0].mxu0 %v728
        %v851 = vpop.f32.mrb[0].mxu0
        %v852 = vadd.f32 %v583, %v851
        %v853 = vpop.f32.mrb[0].mxu0
        %v854 = vadd.f32 %v585, %v853
        %855 = vmatprep.mubr.f32.mxu0 0.0
        %856 = vmatmul.mubr.f32.gmra.mrb[0].mxu0 %v730
        %v857 = vpop.f32.mrb[0].mxu0
        %v858 = vadd.f32 %v589, %v857
        %v859 = vpop.f32.mrb[0].mxu0
        %v860 = vadd.f32 %v591, %v859
        %861 = vmatprep.mubr.f32.mxu0 0.0
        %862 = vmatmul.mubr.f32.gmra.mrb[0].mxu0 %v732
        %v863 = vpop.f32.mrb[0].mxu0
        %v864 = vadd.f32 %v595, %v863
        %v865 = vpop.f32.mrb[0].mxu0
        %v866 = vadd.f32 %v597, %v865
        %867 = vdwg.mxu0
        %868 = vmatprep.subr.mxu0 0.0
        %869 = vmatpush1.msra.mxu0 %v416
        %870 = vmatprep.subr.mxu0 0.0
        %871 = vmatpush1.msra.mxu0 %v419
        %872 = vmatprep.subr.mxu0 0.0
        %873 = vmatpush1.msra.mxu0 %v741
        %874 = vmatprep.subr.mxu0 0.0
        %875 = vmatpush1.msra.mxu0 0.0
        %876 = vmatprep.subr.mxu0 0.0
        %877 = vmatpush1.msra.mxu0 0.0
        %878 = vmatprep.subr.mxu0 0.0
        %879 = vmatpush1.msra.mxu0 0.0
        %880 = vmatprep.subr.mxu0 0.0
        %881 = vmatpush1.msra.mxu0 0.0
        %882 = vmatprep.subr.mxu0 0.0
        %883 = vmatpush1.msra.mxu0 0.0
        %884 = vmatprep.subr.mxu0 0.0
        %885 = vmatpush1.msra.mxu0 0.0
        %886 = vmatprep.subr.mxu0 0.0
        %887 = vmatpush1.msra.mxu0 0.0
        %888 = vmatprep.subr.mxu0 0.0
        %889 = vmatpush1.msra.mxu0 0.0
        %890 = vmatprep.subr.mxu0 0.0
        %891 = vmatpush1.msra.mxu0 0.0
        %892 = vmatprep.subr.mxu0 0.0
        %893 = vmatpush1.msra.mxu0 0.0
        %894 = vmatprep.subr.mxu0 0.0
        %895 = vmatpush1.msra.mxu0 0.0
        %896 = vmatprep.subr.mxu0 0.0
        %897 = vmatpush1.msra.mxu0 0.0
        %898 = vmatprep.subr.mxu0 0.0
        %899 = vmatpush1.msra.mxu0 0.0
        %900 = vmatprep.subr.mxu0 0.0
        %901 = vmatpush1.msra.mxu0 0.0
        %902 = vmatprep.subr.mxu0 0.0
        %903 = vmatpush1.msra.mxu0 0.0
        %904 = vmatprep.subr.mxu0 0.0
        %905 = vmatpush1.msra.mxu0 0.0
        %906 = vmatprep.subr.mxu0 0.0
        %907 = vmatpush1.msra.mxu0 0.0
        %908 = vmatprep.subr.mxu0 0.0
        %909 = vmatpush1.msra.mxu0 0.0
        %910 = vmatprep.subr.mxu0 0.0
        %911 = vmatpush1.msra.mxu0 0.0
        %912 = vmatprep.subr.mxu0 0.0
        %913 = vmatpush1.msra.mxu0 0.0
        %914 = vmatprep.subr.mxu0 0.0
        %915 = vmatpush1.msra.mxu0 0.0
        %916 = vmatprep.subr.mxu0 0.0
        %917 = vmatpush1.msra.mxu0 0.0
        %918 = vmatprep.subr.mxu0 0.0
        %919 = vmatpush1.msra.mxu0 0.0
        %920 = vmatprep.subr.mxu0 0.0
        %921 = vmatpush1.msra.mxu0 0.0
        %922 = vmatprep.subr.mxu0 0.0
        %923 = vmatpush1.msra.mxu0 0.0
        %924 = vmatprep.subr.mxu0 0.0
        %925 = vmatpush1.msra.mxu0 0.0
        %926 = vmatprep.subr.mxu0 0.0
        %927 = vmatpush1.msra.mxu0 0.0
        %928 = vmatprep.subr.mxu0 0.0
        %929 = vmatpush1.msra.mxu0 0.0
        %930 = vmatprep.subr.mxu0 0.0
        %931 = vmatpush1.msra.mxu0 0.0
        %932 = vmatprep.mubr.f32.mxu0 0.0
        %933 = vmatmul.mubr.f32.gmra.mrb[0].mxu0 %v714
        %v934 = vpop.f32.mrb[0].mxu0
        %v935 = vadd.f32 %v666, %v934
        %v936 = vpop.f32.mrb[0].mxu0
        %937 = vmatprep.mubr.f32.mxu0 0.0
        %938 = vmatmul.mubr.f32.gmra.mrb[0].mxu0 %v716
        %v939 = vpop.f32.mrb[0].mxu0
        %v940 = vadd.f32 %v671, %v939
        %v941 = vpop.f32.mrb[0].mxu0
        %942 = vmatprep.mubr.f32.mxu0 0.0
        %943 = vmatmul.mubr.f32.gmra.mrb[0].mxu0 %v718
        %v944 = vpop.f32.mrb[0].mxu0
        %v945 = vadd.f32 %v676, %v944
        %v946 = vpop.f32.mrb[0].mxu0
        %947 = vmatprep.mubr.f32.mxu0 0.0
        %948 = vmatmul.mubr.f32.gmra.mrb[0].mxu0 %v720
        %v949 = vpop.f32.mrb[0].mxu0
        %v950 = vadd.f32 %v681, %v949
        %v951 = vpop.f32.mrb[0].mxu0
        %952 = vmatprep.mubr.f32.mxu0 0.0
        %953 = vmatmul.mubr.f32.gmra.mrb[0].mxu0 %v722
        %v954 = vpop.f32.mrb[0].mxu0
        %v955 = vadd.f32 %v686, %v954
        %v956 = vpop.f32.mrb[0].mxu0
        %957 = vmatprep.mubr.f32.mxu0 0.0
        %958 = vmatmul.mubr.f32.gmra.mrb[0].mxu0 %v724
        %v959 = vpop.f32.mrb[0].mxu0
        %v960 = vadd.f32 %v691, %v959
        %v961 = vpop.f32.mrb[0].mxu0
        %962 = vmatprep.mubr.f32.mxu0 0.0
        %963 = vmatmul.mubr.f32.gmra.mrb[0].mxu0 %v726
        %v964 = vpop.f32.mrb[0].mxu0
        %v965 = vadd.f32 %v696, %v964
        %v966 = vpop.f32.mrb[0].mxu0
        %967 = vmatprep.mubr.f32.mxu0 0.0
        %968 = vmatmul.mubr.f32.gmra.mrb[0].mxu0 %v728
        %v969 = vpop.f32.mrb[0].mxu0
        %v970 = vadd.f32 %v701, %v969
        %v971 = vpop.f32.mrb[0].mxu0
        %972 = vmatprep.mubr.f32.mxu0 0.0
        %973 = vmatmul.mubr.f32.gmra.mrb[0].mxu0 %v730
        %v974 = vpop.f32.mrb[0].mxu0
        %v975 = vadd.f32 %v706, %v974
        %v976 = vpop.f32.mrb[0].mxu0
        %977 = vmatprep.mubr.f32.mxu0 0.0
        %978 = vmatmul.mubr.f32.gmra.mrb[0].mxu0 %v732
        %v979 = vpop.f32.mrb[0].mxu0
        %v980 = vadd.f32 %v711, %v979
        %v981 = vpop.f32.mrb[0].mxu0
        %982 = vdwg.mxu0
        %s983 = scalar_lea.vmem %s2, 144
        %v984 = vld [vmem:[%s983] sm:$0xff]
        %v985 = vld [vmem:[%s983 + $0x8] sm:$0xff]
        %v986 = vld [vmem:[%s983 + $0x10] sm:$0xff]
        %v987 = vld [vmem:[%s983 + $0x18] sm:$0xff]
        %v988 = vld [vmem:[%s983 + $0x20] sm:$0xff]
        %v989 = vld [vmem:[%s983 + $0x28] sm:$0xff]
        %v990 = vld [vmem:[%s983 + $0x30] sm:$0x3]
        %v991 = vld [vmem:[%s983 + $0x38] sm:$0x3]
        %v992 = vld [vmem:[%s983 + $0x40] sm:$0x3]
        %v993 = vsel %vm433, %v386, 0
        %v995 = vsel %vm433, %v389, 0
        %v997 = vsel %vm433, %v392, 0
        %v999 = vsel %vm433, %v395, 0
        %v1001 = vsel %vm433, %v398, 0
        %v1003 = vsel %vm433, %v401, 0
        %v1005 = vsel %vm433, %v404, 0
        %v1007 = vsel %vm433, %v407, 0
        %v1009 = vsel %vm433, %v410, 0
        %v1011 = vsel %vm433, %v413, 0
        %v1014 = vsel %vm464, %v990, 0
        %v1017 = vsel %vm464, %v991, 0
        %v1020 = vsel %vm464, %v992, 0
        %1022 = vmatprep.subr.mxu0 %v985
        %1023 = vmatpush1.msra.mxu0 %v984
        %1024 = vmatprep.subr.mxu0 %v988
        %1025 = vmatpush1.msra.mxu0 %v987
        %1026 = vmatprep.subr.mxu0 %v1017
        %1027 = vmatpush1.msra.mxu0 %v1014
        %1028 = vmatprep.subr.mxu0 0.0
        %1029 = vmatpush1.msra.mxu0 0.0
        %1030 = vmatprep.subr.mxu0 0.0
        %1031 = vmatpush1.msra.mxu0 0.0
        %1032 = vmatprep.subr.mxu0 0.0
        %1033 = vmatpush1.msra.mxu0 0.0
        %1034 = vmatprep.subr.mxu0 0.0
        %1035 = vmatpush1.msra.mxu0 0.0
        %1036 = vmatprep.subr.mxu0 0.0
        %1037 = vmatpush1.msra.mxu0 0.0
        %1038 = vmatprep.subr.mxu0 0.0
        %1039 = vmatpush1.msra.mxu0 0.0
        %1040 = vmatprep.subr.mxu0 0.0
        %1041 = vmatpush1.msra.mxu0 0.0
        %1042 = vmatprep.subr.mxu0 0.0
        %1043 = vmatpush1.msra.mxu0 0.0
        %1044 = vmatprep.subr.mxu0 0.0
        %1045 = vmatpush1.msra.mxu0 0.0
        %1046 = vmatprep.subr.mxu0 0.0
        %1047 = vmatpush1.msra.mxu0 0.0
        %1048 = vmatprep.subr.mxu0 0.0
        %1049 = vmatpush1.msra.mxu0 0.0
        %1050 = vmatprep.subr.mxu0 0.0
        %1051 = vmatpush1.msra.mxu0 0.0
        %1052 = vmatprep.subr.mxu0 0.0
        %1053 = vmatpush1.msra.mxu0 0.0
        %1054 = vmatprep.subr.mxu0 0.0
        %1055 = vmatpush1.msra.mxu0 0.0
        %1056 = vmatprep.subr.mxu0 0.0
        %1057 = vmatpush1.msra.mxu0 0.0
        %1058 = vmatprep.subr.mxu0 0.0
        %1059 = vmatpush1.msra.mxu0 0.0
        %1060 = vmatprep.subr.mxu0 0.0
        %1061 = vmatpush1.msra.mxu0 0.0
        %1062 = vmatprep.subr.mxu0 0.0
        %1063 = vmatpush1.msra.mxu0 0.0
        %1064 = vmatprep.subr.mxu0 0.0
        %1065 = vmatpush1.msra.mxu0 0.0
        %1066 = vmatprep.subr.mxu0 0.0
        %1067 = vmatpush1.msra.mxu0 0.0
        %1068 = vmatprep.subr.mxu0 0.0
        %1069 = vmatpush1.msra.mxu0 0.0
        %1070 = vmatprep.subr.mxu0 0.0
        %1071 = vmatpush1.msra.mxu0 0.0
        %1072 = vmatprep.subr.mxu0 0.0
        %1073 = vmatpush1.msra.mxu0 0.0
        %1074 = vmatprep.subr.mxu0 0.0
        %1075 = vmatpush1.msra.mxu0 0.0
        %1076 = vmatprep.subr.mxu0 0.0
        %1077 = vmatpush1.msra.mxu0 0.0
        %1078 = vmatprep.subr.mxu0 0.0
        %1079 = vmatpush1.msra.mxu0 0.0
        %1080 = vmatprep.subr.mxu0 0.0
        %1081 = vmatpush1.msra.mxu0 0.0
        %1082 = vmatprep.subr.mxu0 0.0
        %1083 = vmatpush1.msra.mxu0 0.0
        %1084 = vmatprep.subr.mxu0 0.0
        %1085 = vmatpush1.msra.mxu0 0.0
        %1086 = vmatprep.mubr.f32.mxu0 0.0
        %1087 = vmatmul.mubr.f32.gmra.mrb[0].mxu0 %v993
        %v1088 = vpop.f32.mrb[0].mxu0
        %v1089 = vadd.f32 0.0, %v1088
        %v1090 = vpop.f32.mrb[0].mxu0
        %v1091 = vadd.f32 0.0, %v1090
        %1092 = vmatprep.mubr.f32.mxu0 0.0
        %1093 = vmatmul.mubr.f32.gmra.mrb[0].mxu0 %v995
        %v1094 = vpop.f32.mrb[0].mxu0
        %v1095 = vadd.f32 0.0, %v1094
        %v1096 = vpop.f32.mrb[0].mxu0
        %v1097 = vadd.f32 0.0, %v1096
        %1098 = vmatprep.mubr.f32.mxu0 0.0
        %1099 = vmatmul.mubr.f32.gmra.mrb[0].mxu0 %v997
        %v1100 = vpop.f32.mrb[0].mxu0
        %v1101 = vadd.f32 0.0, %v1100
        %v1102 = vpop.f32.mrb[0].mxu0
        %v1103 = vadd.f32 0.0, %v1102
        %1104 = vmatprep.mubr.f32.mxu0 0.0
        %1105 = vmatmul.mubr.f32.gmra.mrb[0].mxu0 %v999
        %v1106 = vpop.f32.mrb[0].mxu0
        %v1107 = vadd.f32 0.0, %v1106
        %v1108 = vpop.f32.mrb[0].mxu0
        %v1109 = vadd.f32 0.0, %v1108
        %1110 = vmatprep.mubr.f32.mxu0 0.0
        %1111 = vmatmul.mubr.f32.gmra.mrb[0].mxu0 %v1001
        %v1112 = vpop.f32.mrb[0].mxu0
        %v1113 = vadd.f32 0.0, %v1112
        %v1114 = vpop.f32.mrb[0].mxu0
        %v1115 = vadd.f32 0.0, %v1114
        %1116 = vmatprep.mubr.f32.mxu0 0.0
        %1117 = vmatmul.mubr.f32.gmra.mrb[0].mxu0 %v1003
        %v1118 = vpop.f32.mrb[0].mxu0
        %v1119 = vadd.f32 0.0, %v1118
        %v1120 = vpop.f32.mrb[0].mxu0
        %v1121 = vadd.f32 0.0, %v1120
        %1122 = vmatprep.mubr.f32.mxu0 0.0
        %1123 = vmatmul.mubr.f32.gmra.mrb[0].mxu0 %v1005
        %v1124 = vpop.f32.mrb[0].mxu0
        %v1125 = vadd.f32 0.0, %v1124
        %v1126 = vpop.f32.mrb[0].mxu0
        %v1127 = vadd.f32 0.0, %v1126
        %1128 = vmatprep.mubr.f32.mxu0 0.0
        %1129 = vmatmul.mubr.f32.gmra.mrb[0].mxu0 %v1007
        %v1130 = vpop.f32.mrb[0].mxu0
        %v1131 = vadd.f32 0.0, %v1130
        %v1132 = vpop.f32.mrb[0].mxu0
        %v1133 = vadd.f32 0.0, %v1132
        %1134 = vmatprep.mubr.f32.mxu0 0.0
        %1135 = vmatmul.mubr.f32.gmra.mrb[0].mxu0 %v1009
        %v1136 = vpop.f32.mrb[0].mxu0
        %v1137 = vadd.f32 0.0, %v1136
        %v1138 = vpop.f32.mrb[0].mxu0
        %v1139 = vadd.f32 0.0, %v1138
        %1140 = vmatprep.mubr.f32.mxu0 0.0
        %1141 = vmatmul.mubr.f32.gmra.mrb[0].mxu0 %v1011
        %v1142 = vpop.f32.mrb[0].mxu0
        %v1143 = vadd.f32 0.0, %v1142
        %v1144 = vpop.f32.mrb[0].mxu0
        %v1145 = vadd.f32 0.0, %v1144
        %1146 = vdwg.mxu0
        %1147 = vmatprep.subr.mxu0 0.0
        %1148 = vmatpush1.msra.mxu0 %v986
        %1149 = vmatprep.subr.mxu0 0.0
        %1150 = vmatpush1.msra.mxu0 %v989
        %1151 = vmatprep.subr.mxu0 0.0
        %1152 = vmatpush1.msra.mxu0 %v1020
        %1153 = vmatprep.subr.mxu0 0.0
        %1154 = vmatpush1.msra.mxu0 0.0
        %1155 = vmatprep.subr.mxu0 0.0
        %1156 = vmatpush1.msra.mxu0 0.0
        %1157 = vmatprep.subr.mxu0 0.0
        %1158 = vmatpush1.msra.mxu0 0.0
        %1159 = vmatprep.subr.mxu0 0.0
        %1160 = vmatpush1.msra.mxu0 0.0
        %1161 = vmatprep.subr.mxu0 0.0
        %1162 = vmatpush1.msra.mxu0 0.0
        %1163 = vmatprep.subr.mxu0 0.0
        %1164 = vmatpush1.msra.mxu0 0.0
        %1165 = vmatprep.subr.mxu0 0.0
        %1166 = vmatpush1.msra.mxu0 0.0
        %1167 = vmatprep.subr.mxu0 0.0
        %1168 = vmatpush1.msra.mxu0 0.0
        %1169 = vmatprep.subr.mxu0 0.0
        %1170 = vmatpush1.msra.mxu0 0.0
        %1171 = vmatprep.subr.mxu0 0.0
        %1172 = vmatpush1.msra.mxu0 0.0
        %1173 = vmatprep.subr.mxu0 0.0
        %1174 = vmatpush1.msra.mxu0 0.0
        %1175 = vmatprep.subr.mxu0 0.0
        %1176 = vmatpush1.msra.mxu0 0.0
        %1177 = vmatprep.subr.mxu0 0.0
        %1178 = vmatpush1.msra.mxu0 0.0
        %1179 = vmatprep.subr.mxu0 0.0
        %1180 = vmatpush1.msra.mxu0 0.0
        %1181 = vmatprep.subr.mxu0 0.0
        %1182 = vmatpush1.msra.mxu0 0.0
        %1183 = vmatprep.subr.mxu0 0.0
        %1184 = vmatpush1.msra.mxu0 0.0
        %1185 = vmatprep.subr.mxu0 0.0
        %1186 = vmatpush1.msra.mxu0 0.0
        %1187 = vmatprep.subr.mxu0 0.0
        %1188 = vmatpush1.msra.mxu0 0.0
        %1189 = vmatprep.subr.mxu0 0.0
        %1190 = vmatpush1.msra.mxu0 0.0
        %1191 = vmatprep.subr.mxu0 0.0
        %1192 = vmatpush1.msra.mxu0 0.0
        %1193 = vmatprep.subr.mxu0 0.0
        %1194 = vmatpush1.msra.mxu0 0.0
        %1195 = vmatprep.subr.mxu0 0.0
        %1196 = vmatpush1.msra.mxu0 0.0
        %1197 = vmatprep.subr.mxu0 0.0
        %1198 = vmatpush1.msra.mxu0 0.0
        %1199 = vmatprep.subr.mxu0 0.0
        %1200 = vmatpush1.msra.mxu0 0.0
        %1201 = vmatprep.subr.mxu0 0.0
        %1202 = vmatpush1.msra.mxu0 0.0
        %1203 = vmatprep.subr.mxu0 0.0
        %1204 = vmatpush1.msra.mxu0 0.0
        %1205 = vmatprep.subr.mxu0 0.0
        %1206 = vmatpush1.msra.mxu0 0.0
        %1207 = vmatprep.subr.mxu0 0.0
        %1208 = vmatpush1.msra.mxu0 0.0
        %1209 = vmatprep.subr.mxu0 0.0
        %1210 = vmatpush1.msra.mxu0 0.0
        %1211 = vmatprep.mubr.f32.mxu0 0.0
        %1212 = vmatmul.mubr.f32.gmra.mrb[0].mxu0 %v993
        %v1213 = vpop.f32.mrb[0].mxu0
        %v1214 = vadd.f32 0.0, %v1213
        %v1215 = vpop.f32.mrb[0].mxu0
        %1216 = vmatprep.mubr.f32.mxu0 0.0
        %1217 = vmatmul.mubr.f32.gmra.mrb[0].mxu0 %v995
        %v1218 = vpop.f32.mrb[0].mxu0
        %v1219 = vadd.f32 0.0, %v1218
        %v1220 = vpop.f32.mrb[0].mxu0
        %1221 = vmatprep.mubr.f32.mxu0 0.0
        %1222 = vmatmul.mubr.f32.gmra.mrb[0].mxu0 %v997
        %v1223 = vpop.f32.mrb[0].mxu0
        %v1224 = vadd.f32 0.0, %v1223
        %v1225 = vpop.f32.mrb[0].mxu0
        %1226 = vmatprep.mubr.f32.mxu0 0.0
        %1227 = vmatmul.mubr.f32.gmra.mrb[0].mxu0 %v999
        %v1228 = vpop.f32.mrb[0].mxu0
        %v1229 = vadd.f32 0.0, %v1228
        %v1230 = vpop.f32.mrb[0].mxu0
        %1231 = vmatprep.mubr.f32.mxu0 0.0
        %1232 = vmatmul.mubr.f32.gmra.mrb[0].mxu0 %v1001
        %v1233 = vpop.f32.mrb[0].mxu0
        %v1234 = vadd.f32 0.0, %v1233
        %v1235 = vpop.f32.mrb[0].mxu0
        %1236 = vmatprep.mubr.f32.mxu0 0.0
        %1237 = vmatmul.mubr.f32.gmra.mrb[0].mxu0 %v1003
        %v1238 = vpop.f32.mrb[0].mxu0
        %v1239 = vadd.f32 0.0, %v1238
        %v1240 = vpop.f32.mrb[0].mxu0
        %1241 = vmatprep.mubr.f32.mxu0 0.0
        %1242 = vmatmul.mubr.f32.gmra.mrb[0].mxu0 %v1005
        %v1243 = vpop.f32.mrb[0].mxu0
        %v1244 = vadd.f32 0.0, %v1243
        %v1245 = vpop.f32.mrb[0].mxu0
        %1246 = vmatprep.mubr.f32.mxu0 0.0
        %1247 = vmatmul.mubr.f32.gmra.mrb[0].mxu0 %v1007
        %v1248 = vpop.f32.mrb[0].mxu0
        %v1249 = vadd.f32 0.0, %v1248
        %v1250 = vpop.f32.mrb[0].mxu0
        %1251 = vmatprep.mubr.f32.mxu0 0.0
        %1252 = vmatmul.mubr.f32.gmra.mrb[0].mxu0 %v1009
        %v1253 = vpop.f32.mrb[0].mxu0
        %v1254 = vadd.f32 0.0, %v1253
        %v1255 = vpop.f32.mrb[0].mxu0
        %1256 = vmatprep.mubr.f32.mxu0 0.0
        %1257 = vmatmul.mubr.f32.gmra.mrb[0].mxu0 %v1011
        %v1258 = vpop.f32.mrb[0].mxu0
        %v1259 = vadd.f32 0.0, %v1258
        %v1260 = vpop.f32.mrb[0].mxu0
        %1261 = vdwg.mxu0
        %v1262 = vadd.f32 %v810, %v1089
        %v1263 = vadd.f32 %v812, %v1091
        %v1264 = vadd.f32 %v935, %v1214
        %v1265 = vadd.f32 %v816, %v1095
        %v1266 = vadd.f32 %v818, %v1097
        %v1267 = vadd.f32 %v940, %v1219
        %v1268 = vadd.f32 %v822, %v1101
        %v1269 = vadd.f32 %v824, %v1103
        %v1270 = vadd.f32 %v945, %v1224
        %v1271 = vadd.f32 %v828, %v1107
        %v1272 = vadd.f32 %v830, %v1109
        %v1273 = vadd.f32 %v950, %v1229
        %v1274 = vadd.f32 %v834, %v1113
        %v1275 = vadd.f32 %v836, %v1115
        %v1276 = vadd.f32 %v955, %v1234
        %v1277 = vadd.f32 %v840, %v1119
        %v1278 = vadd.f32 %v842, %v1121
        %v1279 = vadd.f32 %v960, %v1239
        %v1280 = vadd.f32 %v846, %v1125
        %v1281 = vadd.f32 %v848, %v1127
        %v1282 = vadd.f32 %v965, %v1244
        %v1283 = vadd.f32 %v852, %v1131
        %v1284 = vadd.f32 %v854, %v1133
        %v1285 = vadd.f32 %v970, %v1249
        %v1286 = vadd.f32 %v858, %v1137
        %v1287 = vadd.f32 %v860, %v1139
        %v1288 = vadd.f32 %v975, %v1254
        %v1289 = vadd.f32 %v864, %v1143
        %v1290 = vadd.f32 %v866, %v1145
        %v1291 = vadd.f32 %v980, %v1259
        %v1292 = vld [vmem:[%s3] sm:$0x7]
        %v1294 = vlaneseq
        %v1295 = vshrl.u32 %v1294, 7
        %v1296 = vsub.s32 0, %v1295
        %v1297 = vrot.slane %v1292, %v1296
        %v1298 = vlaneseq
        %v1299 = vshrl.u32 %v1298, 7
        %v1300 = vsub.s32 1, %v1299
        %v1301 = vrot.slane %v1292, %v1300
        %v1302 = vlaneseq
        %v1303 = vshrl.u32 %v1302, 7
        %v1304 = vsub.s32 2, %v1303
        %v1305 = vrot.slane %v1292, %v1304
        %v1309 = vadd.f32 %v1262, %v1297
        %v1310 = vadd.f32 %v1263, %v1301
        %v1311 = vadd.f32 %v1264, %v1305
        %v1312 = vadd.f32 %v1265, %v1297
        %v1313 = vadd.f32 %v1266, %v1301
        %v1314 = vadd.f32 %v1267, %v1305
        %v1315 = vadd.f32 %v1268, %v1297
        %v1316 = vadd.f32 %v1269, %v1301
        %v1317 = vadd.f32 %v1270, %v1305
        %v1318 = vadd.f32 %v1271, %v1297
        %v1319 = vadd.f32 %v1272, %v1301
        %v1320 = vadd.f32 %v1273, %v1305
        %v1321 = vadd.f32 %v1274, %v1297
        %v1322 = vadd.f32 %v1275, %v1301
        %v1323 = vadd.f32 %v1276, %v1305
        %v1324 = vadd.f32 %v1277, %v1297
        %v1325 = vadd.f32 %v1278, %v1301
        %v1326 = vadd.f32 %v1279, %v1305
        %v1327 = vadd.f32 %v1280, %v1297
        %v1328 = vadd.f32 %v1281, %v1301
        %v1329 = vadd.f32 %v1282, %v1305
        %v1330 = vadd.f32 %v1283, %v1297
        %v1331 = vadd.f32 %v1284, %v1301
        %v1332 = vadd.f32 %v1285, %v1305
        %v1333 = vadd.f32 %v1286, %v1297
        %v1334 = vadd.f32 %v1287, %v1301
        %v1335 = vadd.f32 %v1288, %v1305
        %v1336 = vadd.f32 %v1289, %v1297
        %v1337 = vadd.f32 %v1290, %v1301
        %v1338 = vadd.f32 %v1291, %v1305
        %v1339 = vxor.u32 %v1309, 2147483648
        %v1340 = vxor.u32 %v1310, 2147483648
        %v1341 = vxor.u32 %v1311, 2147483648
        %v1342 = vxor.u32 %v1312, 2147483648
        %v1343 = vxor.u32 %v1313, 2147483648
        %v1344 = vxor.u32 %v1314, 2147483648
        %v1345 = vxor.u32 %v1315, 2147483648
        %v1346 = vxor.u32 %v1316, 2147483648
        %v1347 = vxor.u32 %v1317, 2147483648
        %v1348 = vxor.u32 %v1318, 2147483648
        %v1349 = vxor.u32 %v1319, 2147483648
        %v1350 = vxor.u32 %v1320, 2147483648
        %v1351 = vxor.u32 %v1321, 2147483648
        %v1352 = vxor.u32 %v1322, 2147483648
        %v1353 = vxor.u32 %v1323, 2147483648
        %v1354 = vxor.u32 %v1324, 2147483648
        %v1355 = vxor.u32 %v1325, 2147483648
        %v1356 = vxor.u32 %v1326, 2147483648
        %v1357 = vxor.u32 %v1327, 2147483648
        %v1358 = vxor.u32 %v1328, 2147483648
        %v1359 = vxor.u32 %v1329, 2147483648
        %v1360 = vxor.u32 %v1330, 2147483648
        %v1361 = vxor.u32 %v1331, 2147483648
        %v1362 = vxor.u32 %v1332, 2147483648
        %v1363 = vxor.u32 %v1333, 2147483648
        %v1364 = vxor.u32 %v1334, 2147483648
        %v1365 = vxor.u32 %v1335, 2147483648
        %v1366 = vxor.u32 %v1336, 2147483648
        %v1367 = vxor.u32 %v1337, 2147483648
        %v1368 = vxor.u32 %v1338, 2147483648
        %v1369 = vmul.f32 %v1339, 1.442695
        %v1370 = vpow.pop %v1369
        %v1371 = vmul.f32 %v1340, 1.442695
        %v1372 = vpow.pop %v1371
        %v1373 = vmul.f32 %v1341, 1.442695
        %v1374 = vpow.pop %v1373
        %v1375 = vmul.f32 %v1342, 1.442695
        %v1376 = vpow.pop %v1375
        %v1377 = vmul.f32 %v1343, 1.442695
        %v1378 = vpow.pop %v1377
        %v1379 = vmul.f32 %v1344, 1.442695
        %v1380 = vpow.pop %v1379
        %v1381 = vmul.f32 %v1345, 1.442695
        %v1382 = vpow.pop %v1381
        %v1383 = vmul.f32 %v1346, 1.442695
        %v1384 = vpow.pop %v1383
        %v1385 = vmul.f32 %v1347, 1.442695
        %v1386 = vpow.pop %v1385
        %v1387 = vmul.f32 %v1348, 1.442695
        %v1388 = vpow.pop %v1387
        %v1389 = vmul.f32 %v1349, 1.442695
        %v1390 = vpow.pop %v1389
        %v1391 = vmul.f32 %v1350, 1.442695
        %v1392 = vpow.pop %v1391
        %v1393 = vmul.f32 %v1351, 1.442695
        %v1394 = vpow.pop %v1393
        %v1395 = vmul.f32 %v1352, 1.442695
        %v1396 = vpow.pop %v1395
        %v1397 = vmul.f32 %v1353, 1.442695
        %v1398 = vpow.pop %v1397
        %v1399 = vmul.f32 %v1354, 1.442695
        %v1400 = vpow.pop %v1399
        %v1401 = vmul.f32 %v1355, 1.442695
        %v1402 = vpow.pop %v1401
        %v1403 = vmul.f32 %v1356, 1.442695
        %v1404 = vpow.pop %v1403
        %v1405 = vmul.f32 %v1357, 1.442695
        %v1406 = vpow.pop %v1405
        %v1407 = vmul.f32 %v1358, 1.442695
        %v1408 = vpow.pop %v1407
        %v1409 = vmul.f32 %v1359, 1.442695
        %v1410 = vpow.pop %v1409
        %v1411 = vmul.f32 %v1360, 1.442695
        %v1412 = vpow.pop %v1411
        %v1413 = vmul.f32 %v1361, 1.442695
        %v1414 = vpow.pop %v1413
        %v1415 = vmul.f32 %v1362, 1.442695
        %v1416 = vpow.pop %v1415
        %v1417 = vmul.f32 %v1363, 1.442695
        %v1418 = vpow.pop %v1417
        %v1419 = vmul.f32 %v1364, 1.442695
        %v1420 = vpow.pop %v1419
        %v1421 = vmul.f32 %v1365, 1.442695
        %v1422 = vpow.pop %v1421
        %v1423 = vmul.f32 %v1366, 1.442695
        %v1424 = vpow.pop %v1423
        %v1425 = vmul.f32 %v1367, 1.442695
        %v1426 = vpow.pop %v1425
        %v1427 = vmul.f32 %v1368, 1.442695
        %v1428 = vpow.pop %v1427
        %v1429 = vadd.f32 %v1370, 1.0
        %v1430 = vadd.f32 %v1372, 1.0
        %v1431 = vadd.f32 %v1374, 1.0
        %v1432 = vadd.f32 %v1376, 1.0
        %v1433 = vadd.f32 %v1378, 1.0
        %v1434 = vadd.f32 %v1380, 1.0
        %v1435 = vadd.f32 %v1382, 1.0
        %v1436 = vadd.f32 %v1384, 1.0
        %v1437 = vadd.f32 %v1386, 1.0
        %v1438 = vadd.f32 %v1388, 1.0
        %v1439 = vadd.f32 %v1390, 1.0
        %v1440 = vadd.f32 %v1392, 1.0
        %v1441 = vadd.f32 %v1394, 1.0
        %v1442 = vadd.f32 %v1396, 1.0
        %v1443 = vadd.f32 %v1398, 1.0
        %v1444 = vadd.f32 %v1400, 1.0
        %v1445 = vadd.f32 %v1402, 1.0
        %v1446 = vadd.f32 %v1404, 1.0
        %v1447 = vadd.f32 %v1406, 1.0
        %v1448 = vadd.f32 %v1408, 1.0
        %v1449 = vadd.f32 %v1410, 1.0
        %v1450 = vadd.f32 %v1412, 1.0
        %v1451 = vadd.f32 %v1414, 1.0
        %v1452 = vadd.f32 %v1416, 1.0
        %v1453 = vadd.f32 %v1418, 1.0
        %v1454 = vadd.f32 %v1420, 1.0
        %v1455 = vadd.f32 %v1422, 1.0
        %v1456 = vadd.f32 %v1424, 1.0
        %v1457 = vadd.f32 %v1426, 1.0
        %v1458 = vadd.f32 %v1428, 1.0
        %v1459 = vrcp.pop %v1429
        %v1460 = vmul.f32 1.0, %v1459
        %v1461 = vrcp.pop %v1430
        %v1462 = vmul.f32 1.0, %v1461
        %v1463 = vrcp.pop %v1431
        %v1464 = vmul.f32 1.0, %v1463
        %v1465 = vrcp.pop %v1432
        %v1466 = vmul.f32 1.0, %v1465
        %v1467 = vrcp.pop %v1433
        %v1468 = vmul.f32 1.0, %v1467
        %v1469 = vrcp.pop %v1434
        %v1470 = vmul.f32 1.0, %v1469
        %v1471 = vrcp.pop %v1435
        %v1472 = vmul.f32 1.0, %v1471
        %v1473 = vrcp.pop %v1436
        %v1474 = vmul.f32 1.0, %v1473
        %v1475 = vrcp.pop %v1437
        %v1476 = vmul.f32 1.0, %v1475
        %v1477 = vrcp.pop %v1438
        %v1478 = vmul.f32 1.0, %v1477
        %v1479 = vrcp.pop %v1439
        %v1480 = vmul.f32 1.0, %v1479
        %v1481 = vrcp.pop %v1440
        %v1482 = vmul.f32 1.0, %v1481
        %v1483 = vrcp.pop %v1441
        %v1484 = vmul.f32 1.0, %v1483
        %v1485 = vrcp.pop %v1442
        %v1486 = vmul.f32 1.0, %v1485
        %v1487 = vrcp.pop %v1443
        %v1488 = vmul.f32 1.0, %v1487
        %v1489 = vrcp.pop %v1444
        %v1490 = vmul.f32 1.0, %v1489
        %v1491 = vrcp.pop %v1445
        %v1492 = vmul.f32 1.0, %v1491
        %v1493 = vrcp.pop %v1446
        %v1494 = vmul.f32 1.0, %v1493
        %v1495 = vrcp.pop %v1447
        %v1496 = vmul.f32 1.0, %v1495
        %v1497 = vrcp.pop %v1448
        %v1498 = vmul.f32 1.0, %v1497
        %v1499 = vrcp.pop %v1449
        %v1500 = vmul.f32 1.0, %v1499
        %v1501 = vrcp.pop %v1450
        %v1502 = vmul.f32 1.0, %v1501
        %v1503 = vrcp.pop %v1451
        %v1504 = vmul.f32 1.0, %v1503
        %v1505 = vrcp.pop %v1452
        %v1506 = vmul.f32 1.0, %v1505
        %v1507 = vrcp.pop %v1453
        %v1508 = vmul.f32 1.0, %v1507
        %v1509 = vrcp.pop %v1454
        %v1510 = vmul.f32 1.0, %v1509
        %v1511 = vrcp.pop %v1455
        %v1512 = vmul.f32 1.0, %v1511
        %v1513 = vrcp.pop %v1456
        %v1514 = vmul.f32 1.0, %v1513
        %v1515 = vrcp.pop %v1457
        %v1516 = vmul.f32 1.0, %v1515
        %v1517 = vrcp.pop %v1458
        %v1518 = vmul.f32 1.0, %v1517
        %v1519 = vmul.f32 %v1309, %v1460
        %v1520 = vmul.f32 %v1310, %v1462
        %v1521 = vmul.f32 %v1311, %v1464
        %v1522 = vmul.f32 %v1312, %v1466
        %v1523 = vmul.f32 %v1313, %v1468
        %v1524 = vmul.f32 %v1314, %v1470
        %v1525 = vmul.f32 %v1315, %v1472
        %v1526 = vmul.f32 %v1316, %v1474
        %v1527 = vmul.f32 %v1317, %v1476
        %v1528 = vmul.f32 %v1318, %v1478
        %v1529 = vmul.f32 %v1319, %v1480
        %v1530 = vmul.f32 %v1320, %v1482
        %v1531 = vmul.f32 %v1321, %v1484
        %v1532 = vmul.f32 %v1322, %v1486
        %v1533 = vmul.f32 %v1323, %v1488
        %v1534 = vmul.f32 %v1324, %v1490
        %v1535 = vmul.f32 %v1325, %v1492
        %v1536 = vmul.f32 %v1326, %v1494
        %v1537 = vmul.f32 %v1327, %v1496
        %v1538 = vmul.f32 %v1328, %v1498
        %v1539 = vmul.f32 %v1329, %v1500
        %v1540 = vmul.f32 %v1330, %v1502
        %v1541 = vmul.f32 %v1331, %v1504
        %v1542 = vmul.f32 %v1332, %v1506
        %v1543 = vmul.f32 %v1333, %v1508
        %v1544 = vmul.f32 %v1334, %v1510
        %v1545 = vmul.f32 %v1335, %v1512
        %v1546 = vmul.f32 %v1336, %v1514
        %v1547 = vmul.f32 %v1337, %v1516
        %v1548 = vmul.f32 %v1338, %v1518
        %v1549 = vrot.slane %v1519, 4
        %v1550 = vadd.f32 %v1519, %v1549
        %v1551 = vrot.slane %v1550, 2
        %v1552 = vadd.f32 %v1550, %v1551
        %v1553 = vrot.slane %v1552, 1
        %v1554 = vadd.f32 %v1552, %v1553
        %v1555 = vrot.slane %v1520, 4
        %v1556 = vadd.f32 %v1520, %v1555
        %v1557 = vrot.slane %v1556, 2
        %v1558 = vadd.f32 %v1556, %v1557
        %v1559 = vrot.slane %v1558, 1
        %v1560 = vadd.f32 %v1558, %v1559
        %v1561 = vrot.slane %v1521, 4
        %v1562 = vadd.f32 %v1521, %v1561
        %v1563 = vrot.slane %v1562, 2
        %v1564 = vadd.f32 %v1562, %v1563
        %v1565 = vrot.slane %v1564, 1
        %v1566 = vadd.f32 %v1564, %v1565
        %v1567 = vrot.slane %v1522, 4
        %v1568 = vadd.f32 %v1522, %v1567
        %v1569 = vrot.slane %v1568, 2
        %v1570 = vadd.f32 %v1568, %v1569
        %v1571 = vrot.slane %v1570, 1
        %v1572 = vadd.f32 %v1570, %v1571
        %v1573 = vrot.slane %v1523, 4
        %v1574 = vadd.f32 %v1523, %v1573
        %v1575 = vrot.slane %v1574, 2
        %v1576 = vadd.f32 %v1574, %v1575
        %v1577 = vrot.slane %v1576, 1
        %v1578 = vadd.f32 %v1576, %v1577
        %v1579 = vrot.slane %v1524, 4
        %v1580 = vadd.f32 %v1524, %v1579
        %v1581 = vrot.slane %v1580, 2
        %v1582 = vadd.f32 %v1580, %v1581
        %v1583 = vrot.slane %v1582, 1
        %v1584 = vadd.f32 %v1582, %v1583
        %v1585 = vrot.slane %v1525, 4
        %v1586 = vadd.f32 %v1525, %v1585
        %v1587 = vrot.slane %v1586, 2
        %v1588 = vadd.f32 %v1586, %v1587
        %v1589 = vrot.slane %v1588, 1
        %v1590 = vadd.f32 %v1588, %v1589
        %v1591 = vrot.slane %v1526, 4
        %v1592 = vadd.f32 %v1526, %v1591
        %v1593 = vrot.slane %v1592, 2
        %v1594 = vadd.f32 %v1592, %v1593
        %v1595 = vrot.slane %v1594, 1
        %v1596 = vadd.f32 %v1594, %v1595
        %v1597 = vrot.slane %v1527, 4
        %v1598 = vadd.f32 %v1527, %v1597
        %v1599 = vrot.slane %v1598, 2
        %v1600 = vadd.f32 %v1598, %v1599
        %v1601 = vrot.slane %v1600, 1
        %v1602 = vadd.f32 %v1600, %v1601
        %v1603 = vrot.slane %v1528, 4
        %v1604 = vadd.f32 %v1528, %v1603
        %v1605 = vrot.slane %v1604, 2
        %v1606 = vadd.f32 %v1604, %v1605
        %v1607 = vrot.slane %v1606, 1
        %v1608 = vadd.f32 %v1606, %v1607
        %v1609 = vrot.slane %v1529, 4
        %v1610 = vadd.f32 %v1529, %v1609
        %v1611 = vrot.slane %v1610, 2
        %v1612 = vadd.f32 %v1610, %v1611
        %v1613 = vrot.slane %v1612, 1
        %v1614 = vadd.f32 %v1612, %v1613
        %v1615 = vrot.slane %v1530, 4
        %v1616 = vadd.f32 %v1530, %v1615
        %v1617 = vrot.slane %v1616, 2
        %v1618 = vadd.f32 %v1616, %v1617
        %v1619 = vrot.slane %v1618, 1
        %v1620 = vadd.f32 %v1618, %v1619
        %v1621 = vrot.slane %v1531, 4
        %v1622 = vadd.f32 %v1531, %v1621
        %v1623 = vrot.slane %v1622, 2
        %v1624 = vadd.f32 %v1622, %v1623
        %v1625 = vrot.slane %v1624, 1
        %v1626 = vadd.f32 %v1624, %v1625
        %v1627 = vrot.slane %v1532, 4
        %v1628 = vadd.f32 %v1532, %v1627
        %v1629 = vrot.slane %v1628, 2
        %v1630 = vadd.f32 %v1628, %v1629
        %v1631 = vrot.slane %v1630, 1
        %v1632 = vadd.f32 %v1630, %v1631
        %v1633 = vrot.slane %v1533, 4
        %v1634 = vadd.f32 %v1533, %v1633
        %v1635 = vrot.slane %v1634, 2
        %v1636 = vadd.f32 %v1634, %v1635
        %v1637 = vrot.slane %v1636, 1
        %v1638 = vadd.f32 %v1636, %v1637
        %v1639 = vrot.slane %v1534, 4
        %v1640 = vadd.f32 %v1534, %v1639
        %v1641 = vrot.slane %v1640, 2
        %v1642 = vadd.f32 %v1640, %v1641
        %v1643 = vrot.slane %v1642, 1
        %v1644 = vadd.f32 %v1642, %v1643
        %v1645 = vrot.slane %v1535, 4
        %v1646 = vadd.f32 %v1535, %v1645
        %v1647 = vrot.slane %v1646, 2
        %v1648 = vadd.f32 %v1646, %v1647
        %v1649 = vrot.slane %v1648, 1
        %v1650 = vadd.f32 %v1648, %v1649
        %v1651 = vrot.slane %v1536, 4
        %v1652 = vadd.f32 %v1536, %v1651
        %v1653 = vrot.slane %v1652, 2
        %v1654 = vadd.f32 %v1652, %v1653
        %v1655 = vrot.slane %v1654, 1
        %v1656 = vadd.f32 %v1654, %v1655
        %v1657 = vrot.slane %v1537, 4
        %v1658 = vadd.f32 %v1537, %v1657
        %v1659 = vrot.slane %v1658, 2
        %v1660 = vadd.f32 %v1658, %v1659
        %v1661 = vrot.slane %v1660, 1
        %v1662 = vadd.f32 %v1660, %v1661
        %v1663 = vrot.slane %v1538, 4
        %v1664 = vadd.f32 %v1538, %v1663
        %v1665 = vrot.slane %v1664, 2
        %v1666 = vadd.f32 %v1664, %v1665
        %v1667 = vrot.slane %v1666, 1
        %v1668 = vadd.f32 %v1666, %v1667
        %v1669 = vrot.slane %v1539, 4
        %v1670 = vadd.f32 %v1539, %v1669
        %v1671 = vrot.slane %v1670, 2
        %v1672 = vadd.f32 %v1670, %v1671
        %v1673 = vrot.slane %v1672, 1
        %v1674 = vadd.f32 %v1672, %v1673
        %v1675 = vrot.slane %v1540, 4
        %v1676 = vadd.f32 %v1540, %v1675
        %v1677 = vrot.slane %v1676, 2
        %v1678 = vadd.f32 %v1676, %v1677
        %v1679 = vrot.slane %v1678, 1
        %v1680 = vadd.f32 %v1678, %v1679
        %v1681 = vrot.slane %v1541, 4
        %v1682 = vadd.f32 %v1541, %v1681
        %v1683 = vrot.slane %v1682, 2
        %v1684 = vadd.f32 %v1682, %v1683
        %v1685 = vrot.slane %v1684, 1
        %v1686 = vadd.f32 %v1684, %v1685
        %v1687 = vrot.slane %v1542, 4
        %v1688 = vadd.f32 %v1542, %v1687
        %v1689 = vrot.slane %v1688, 2
        %v1690 = vadd.f32 %v1688, %v1689
        %v1691 = vrot.slane %v1690, 1
        %v1692 = vadd.f32 %v1690, %v1691
        %v1693 = vrot.slane %v1543, 4
        %v1694 = vadd.f32 %v1543, %v1693
        %v1695 = vrot.slane %v1694, 2
        %v1696 = vadd.f32 %v1694, %v1695
        %v1697 = vrot.slane %v1696, 1
        %v1698 = vadd.f32 %v1696, %v1697
        %v1699 = vrot.slane %v1544, 4
        %v1700 = vadd.f32 %v1544, %v1699
        %v1701 = vrot.slane %v1700, 2
        %v1702 = vadd.f32 %v1700, %v1701
        %v1703 = vrot.slane %v1702, 1
        %v1704 = vadd.f32 %v1702, %v1703
        %v1705 = vrot.slane %v1545, 4
        %v1706 = vadd.f32 %v1545, %v1705
        %v1707 = vrot.slane %v1706, 2
        %v1708 = vadd.f32 %v1706, %v1707
        %v1709 = vrot.slane %v1708, 1
        %v1710 = vadd.f32 %v1708, %v1709
        %v1711 = vrot.slane %v1546, 4
        %v1712 = vadd.f32 %v1546, %v1711
        %v1713 = vrot.slane %v1712, 2
        %v1714 = vadd.f32 %v1712, %v1713
        %v1715 = vrot.slane %v1714, 1
        %v1716 = vadd.f32 %v1714, %v1715
        %v1717 = vrot.slane %v1547, 4
        %v1718 = vadd.f32 %v1547, %v1717
        %v1719 = vrot.slane %v1718, 2
        %v1720 = vadd.f32 %v1718, %v1719
        %v1721 = vrot.slane %v1720, 1
        %v1722 = vadd.f32 %v1720, %v1721
        %v1723 = vrot.slane %v1548, 4
        %v1724 = vadd.f32 %v1548, %v1723
        %v1725 = vrot.slane %v1724, 2
        %v1726 = vadd.f32 %v1724, %v1725
        %v1727 = vrot.slane %v1726, 1
        %v1728 = vadd.f32 %v1726, %v1727
        %v1729 = vld [vmem:[%s4] sm:$0xff]
        %v1730 = vld [vmem:[%s4 + $0x8] sm:$0xff]
        %v1731 = vld [vmem:[%s4 + $0x10] sm:$0xff]
        %v1732 = vld [vmem:[%s4 + $0x18] sm:$0xff]
        %v1733 = vld [vmem:[%s4 + $0x20] sm:$0xff]
        %v1734 = vld [vmem:[%s4 + $0x28] sm:$0xff]
        %v1735 = vld [vmem:[%s4 + $0x30] sm:$0xff]
        %v1736 = vld [vmem:[%s4 + $0x38] sm:$0xff]
        %v1737 = vld [vmem:[%s4 + $0x40] sm:$0xff]
        %v1738 = vld [vmem:[%s4 + $0x48] sm:$0xff]
        %v1739 = vld [vmem:[%s4 + $0x50] sm:$0xff]
        %v1740 = vld [vmem:[%s4 + $0x58] sm:$0xff]
        %v1741 = vld [vmem:[%s4 + $0x60] sm:$0xff]
        %v1742 = vld [vmem:[%s4 + $0x68] sm:$0xff]
        %v1743 = vld [vmem:[%s4 + $0x70] sm:$0xff]
        %v1744 = vld [vmem:[%s4 + $0x78] sm:$0xff]
        %v1745 = vld [vmem:[%s4 + $0x80] sm:$0xff]
        %v1746 = vld [vmem:[%s4 + $0x88] sm:$0xff]
        %v1747 = vld [vmem:[%s4 + $0x90] sm:$0xff]
        %v1748 = vld [vmem:[%s4 + $0x98] sm:$0xff]
        %v1749 = vld [vmem:[%s4 + $0xa0] sm:$0xff]
        %v1750 = vld [vmem:[%s4 + $0xa8] sm:$0xff]
        %v1751 = vld [vmem:[%s4 + $0xb0] sm:$0xff]
        %v1752 = vld [vmem:[%s4 + $0xb8] sm:$0xff]
        %v1753 = vld [vmem:[%s4 + $0xc0] sm:$0xff]
        %v1754 = vld [vmem:[%s4 + $0xc8] sm:$0xff]
        %v1755 = vld [vmem:[%s4 + $0xd0] sm:$0xff]
        %v1756 = vld [vmem:[%s4 + $0xd8] sm:$0xff]
        %v1757 = vld [vmem:[%s4 + $0xe0] sm:$0xff]
        %v1758 = vld [vmem:[%s4 + $0xe8] sm:$0xff]
        %v1759 = vld [vmem:[%s4 + $0xf0] sm:$0xff]
        %v1760 = vld [vmem:[%s4 + $0xf8] sm:$0xff]
        %v1761 = vld [vmem:[%s4 + $0x100] sm:$0xff]
        %v1762 = vld [vmem:[%s4 + $0x108] sm:$0xff]
        %v1763 = vld [vmem:[%s4 + $0x110] sm:$0xff]
        %v1764 = vld [vmem:[%s4 + $0x118] sm:$0xff]
        %v1765 = vld [vmem:[%s4 + $0x120] sm:$0xff]
        %v1766 = vld [vmem:[%s4 + $0x128] sm:$0xff]
        %v1767 = vld [vmem:[%s4 + $0x130] sm:$0xff]
        %v1768 = vld [vmem:[%s4 + $0x138] sm:$0xff]
        %v1769 = vld [vmem:[%s4 + $0x140] sm:$0xff]
        %v1770 = vld [vmem:[%s4 + $0x148] sm:$0xff]
        %v1771 = vld [vmem:[%s4 + $0x150] sm:$0xff]
        %v1772 = vld [vmem:[%s4 + $0x158] sm:$0xff]
        %v1773 = vld [vmem:[%s4 + $0x160] sm:$0xff]
        %v1774 = vld [vmem:[%s4 + $0x168] sm:$0xff]
        %v1775 = vld [vmem:[%s4 + $0x170] sm:$0xff]
        %v1776 = vld [vmem:[%s4 + $0x178] sm:$0xff]
        %v1777 = vld [vmem:[%s5] sm:$0x1]
        %v1779 = vlaneseq
        %v1780 = vshrl.u32 %v1779, 7
        %v1781 = vsub.s32 0, %v1780
        %v1782 = vrot.slane %v1777, %v1781
        %vm1814 = vcmask 1041409
        %v1815 = vsel %vm1814, %v1572, %v1554
        %vm1816 = vcmask 1042434
        %v1817 = vsel %vm1816, %v1590, %v1815
        %vm1818 = vcmask 1043459
        %v1819 = vsel %vm1818, %v1608, %v1817
        %vm1820 = vcmask 1044484
        %v1821 = vsel %vm1820, %v1626, %v1819
        %vm1822 = vcmask 1045509
        %v1823 = vsel %vm1822, %v1644, %v1821
        %vm1824 = vcmask 1046534
        %v1825 = vsel %vm1824, %v1662, %v1823
        %vm1826 = vcmask 1047559
        %v1827 = vsel %vm1826, %v1680, %v1825
        %v1828 = vsel %vm1814, %v1578, %v1560
        %v1829 = vsel %vm1816, %v1596, %v1828
        %v1830 = vsel %vm1818, %v1614, %v1829
        %v1831 = vsel %vm1820, %v1632, %v1830
        %v1832 = vsel %vm1822, %v1650, %v1831
        %v1833 = vsel %vm1824, %v1668, %v1832
        %v1834 = vsel %vm1826, %v1686, %v1833
        %v1835 = vsel %vm1814, %v1584, %v1566
        %v1836 = vsel %vm1816, %v1602, %v1835
        %v1837 = vsel %vm1818, %v1620, %v1836
        %v1838 = vsel %vm1820, %v1638, %v1837
        %v1839 = vsel %vm1822, %v1656, %v1838
        %v1840 = vsel %vm1824, %v1674, %v1839
        %v1841 = vsel %vm1826, %v1692, %v1840
        %v1842 = vsel %vm1814, %v1716, %v1698
        %v1843 = vsel %vm1814, %v1722, %v1704
        %v1844 = vsel %vm1814, %v1728, %v1710
        %1851 = vmatprep.subr.mxu0 0.0
        %1852 = vmatpush1.msra.mxu0 %v1729
        %1853 = vmatprep.subr.mxu0 0.0
        %1854 = vmatpush1.msra.mxu0 %v1730
        %1855 = vmatprep.subr.mxu0 0.0
        %1856 = vmatpush1.msra.mxu0 %v1731
        %1857 = vmatprep.subr.mxu0 0.0
        %1858 = vmatpush1.msra.mxu0 %v1732
        %1859 = vmatprep.subr.mxu0 0.0
        %1860 = vmatpush1.msra.mxu0 %v1733
        %1861 = vmatprep.subr.mxu0 0.0
        %1862 = vmatpush1.msra.mxu0 %v1734
        %1863 = vmatprep.subr.mxu0 0.0
        %1864 = vmatpush1.msra.mxu0 %v1735
        %1865 = vmatprep.subr.mxu0 0.0
        %1866 = vmatpush1.msra.mxu0 %v1736
        %1867 = vmatprep.subr.mxu0 0.0
        %1868 = vmatpush1.msra.mxu0 %v1737
        %1869 = vmatprep.subr.mxu0 0.0
        %1870 = vmatpush1.msra.mxu0 %v1738
        %1871 = vmatprep.subr.mxu0 0.0
        %1872 = vmatpush1.msra.mxu0 %v1739
        %1873 = vmatprep.subr.mxu0 0.0
        %1874 = vmatpush1.msra.mxu0 %v1740
        %1875 = vmatprep.subr.mxu0 0.0
        %1876 = vmatpush1.msra.mxu0 %v1741
        %1877 = vmatprep.subr.mxu0 0.0
        %1878 = vmatpush1.msra.mxu0 %v1742
        %1879 = vmatprep.subr.mxu0 0.0
        %1880 = vmatpush1.msra.mxu0 %v1743
        %1881 = vmatprep.subr.mxu0 0.0
        %1882 = vmatpush1.msra.mxu0 %v1744
        %1883 = vmatprep.subr.mxu0 0.0
        %1884 = vmatpush1.msra.mxu0 %v1745
        %1885 = vmatprep.subr.mxu0 0.0
        %1886 = vmatpush1.msra.mxu0 %v1746
        %1887 = vmatprep.subr.mxu0 0.0
        %1888 = vmatpush1.msra.mxu0 %v1747
        %1889 = vmatprep.subr.mxu0 0.0
        %1890 = vmatpush1.msra.mxu0 %v1748
        %1891 = vmatprep.subr.mxu0 0.0
        %1892 = vmatpush1.msra.mxu0 %v1749
        %1893 = vmatprep.subr.mxu0 0.0
        %1894 = vmatpush1.msra.mxu0 %v1750
        %1895 = vmatprep.subr.mxu0 0.0
        %1896 = vmatpush1.msra.mxu0 %v1751
        %1897 = vmatprep.subr.mxu0 0.0
        %1898 = vmatpush1.msra.mxu0 %v1752
        %1899 = vmatprep.subr.mxu0 0.0
        %1900 = vmatpush1.msra.mxu0 %v1753
        %1901 = vmatprep.subr.mxu0 0.0
        %1902 = vmatpush1.msra.mxu0 %v1754
        %1903 = vmatprep.subr.mxu0 0.0
        %1904 = vmatpush1.msra.mxu0 %v1755
        %1905 = vmatprep.subr.mxu0 0.0
        %1906 = vmatpush1.msra.mxu0 %v1756
        %1907 = vmatprep.subr.mxu0 0.0
        %1908 = vmatpush1.msra.mxu0 %v1757
        %1909 = vmatprep.subr.mxu0 0.0
        %1910 = vmatpush1.msra.mxu0 %v1758
        %1911 = vmatprep.subr.mxu0 0.0
        %1912 = vmatpush1.msra.mxu0 %v1759
        %1913 = vmatprep.subr.mxu0 0.0
        %1914 = vmatpush1.msra.mxu0 %v1760
        %1915 = vmatprep.mubr.f32.mxu0 %v1834
        %1916 = vmatmul.mubr.f32.gmra.mrb[0].mxu0 %v1827
        %v1917 = vpop.f32.mrb[0].mxu0
        %v1918 = vadd.f32 %v1782, %v1917
        %v1919 = vpop.f32.mrb[0].mxu0
        %1920 = vmatprep.mubr.f32.mxu0 %v1843
        %1921 = vmatmul.mubr.f32.gmra.mrb[0].mxu0 %v1842
        %v1922 = vpop.f32.mrb[0].mxu0
        %v1923 = vadd.f32 %v1782, %v1922
        %v1924 = vpop.f32.mrb[0].mxu0
        %1925 = vdwg.mxu0
        %1926 = vmatprep.subr.mxu0 0.0
        %1927 = vmatpush1.msra.mxu0 %v1761
        %1928 = vmatprep.subr.mxu0 0.0
        %1929 = vmatpush1.msra.mxu0 %v1762
        %1930 = vmatprep.subr.mxu0 0.0
        %1931 = vmatpush1.msra.mxu0 %v1763
        %1932 = vmatprep.subr.mxu0 0.0
        %1933 = vmatpush1.msra.mxu0 %v1764
        %1934 = vmatprep.subr.mxu0 0.0
        %1935 = vmatpush1.msra.mxu0 %v1765
        %1936 = vmatprep.subr.mxu0 0.0
        %1937 = vmatpush1.msra.mxu0 %v1766
        %1938 = vmatprep.subr.mxu0 0.0
        %1939 = vmatpush1.msra.mxu0 %v1767
        %1940 = vmatprep.subr.mxu0 0.0
        %1941 = vmatpush1.msra.mxu0 %v1768
        %1942 = vmatprep.subr.mxu0 0.0
        %1943 = vmatpush1.msra.mxu0 %v1769
        %1944 = vmatprep.subr.mxu0 0.0
        %1945 = vmatpush1.msra.mxu0 %v1770
        %1946 = vmatprep.subr.mxu0 0.0
        %1947 = vmatpush1.msra.mxu0 %v1771
        %1948 = vmatprep.subr.mxu0 0.0
        %1949 = vmatpush1.msra.mxu0 %v1772
        %1950 = vmatprep.subr.mxu0 0.0
        %1951 = vmatpush1.msra.mxu0 %v1773
        %1952 = vmatprep.subr.mxu0 0.0
        %1953 = vmatpush1.msra.mxu0 %v1774
        %1954 = vmatprep.subr.mxu0 0.0
        %1955 = vmatpush1.msra.mxu0 %v1775
        %1956 = vmatprep.subr.mxu0 0.0
        %1957 = vmatpush1.msra.mxu0 %v1776
        %1958 = vmatprep.subr.mxu0 0.0
        %1959 = vmatpush1.msra.mxu0 0.0
        %1960 = vmatprep.subr.mxu0 0.0
        %1961 = vmatpush1.msra.mxu0 0.0
        %1962 = vmatprep.subr.mxu0 0.0
        %1963 = vmatpush1.msra.mxu0 0.0
        %1964 = vmatprep.subr.mxu0 0.0
        %1965 = vmatpush1.msra.mxu0 0.0
        %1966 = vmatprep.subr.mxu0 0.0
        %1967 = vmatpush1.msra.mxu0 0.0
        %1968 = vmatprep.subr.mxu0 0.0
        %1969 = vmatpush1.msra.mxu0 0.0
        %1970 = vmatprep.subr.mxu0 0.0
        %1971 = vmatpush1.msra.mxu0 0.0
        %1972 = vmatprep.subr.mxu0 0.0
        %1973 = vmatpush1.msra.mxu0 0.0
        %1974 = vmatprep.subr.mxu0 0.0
        %1975 = vmatpush1.msra.mxu0 0.0
        %1976 = vmatprep.subr.mxu0 0.0
        %1977 = vmatpush1.msra.mxu0 0.0
        %1978 = vmatprep.subr.mxu0 0.0
        %1979 = vmatpush1.msra.mxu0 0.0
        %1980 = vmatprep.subr.mxu0 0.0
        %1981 = vmatpush1.msra.mxu0 0.0
        %1982 = vmatprep.subr.mxu0 0.0
        %1983 = vmatpush1.msra.mxu0 0.0
        %1984 = vmatprep.subr.mxu0 0.0
        %1985 = vmatpush1.msra.mxu0 0.0
        %1986 = vmatprep.subr.mxu0 0.0
        %1987 = vmatpush1.msra.mxu0 0.0
        %1988 = vmatprep.subr.mxu0 0.0
        %1989 = vmatpush1.msra.mxu0 0.0
        %1990 = vmatprep.mubr.f32.mxu0 0.0
        %1991 = vmatmul.mubr.f32.gmra.mrb[0].mxu0 %v1841
        %v1992 = vpop.f32.mrb[0].mxu0
        %v1993 = vadd.f32 %v1918, %v1992
        %v1994 = vpop.f32.mrb[0].mxu0
        %1995 = vmatprep.mubr.f32.mxu0 0.0
        %1996 = vmatmul.mubr.f32.gmra.mrb[0].mxu0 %v1844
        %v1997 = vpop.f32.mrb[0].mxu0
        %v1998 = vadd.f32 %v1923, %v1997
        %v1999 = vpop.f32.mrb[0].mxu0
        %2000 = vdwg.mxu0
        %v2001 = vxor.u32 %v1993, 2147483648
        %v2002 = vxor.u32 %v1998, 2147483648
        %v2003 = vmul.f32 %v2001, 1.442695
        %v2004 = vpow.pop %v2003
        %v2005 = vmul.f32 %v2002, 1.442695
        %v2006 = vpow.pop %v2005
        %v2007 = vadd.f32 %v2004, 1.0
        %v2008 = vadd.f32 %v2006, 1.0
        %v2009 = vrcp.pop %v2007
        %v2010 = vmul.f32 1.0, %v2009
        %v2011 = vrcp.pop %v2008
        %v2012 = vmul.f32 1.0, %v2011
        %v2013 = vmul.f32 %v1993, %v2010
        %v2014 = vmul.f32 %v1998, %v2012
        %v2015 = vld [vmem:[%s6] sm:$0xff]
        %v2016 = vld [vmem:[%s6 + $0x8] sm:$0xff]
        %v2017 = vld [vmem:[%s6 + $0x10] sm:$0xff]
        %v2018 = vld [vmem:[%s6 + $0x18] sm:$0xff]
        %v2019 = vld [vmem:[%s6 + $0x20] sm:$0xff]
        %v2020 = vld [vmem:[%s6 + $0x28] sm:$0xff]
        %v2021 = vld [vmem:[%s6 + $0x30] sm:$0xff]
        %v2022 = vld [vmem:[%s6 + $0x38] sm:$0xff]
        %s2023 = scalar_lea.vmem %s6, 64
        %v2024 = vld [vmem:[%s2023] sm:$0xff]
        %v2025 = vld [vmem:[%s2023 + $0x8] sm:$0xff]
        %v2026 = vld [vmem:[%s2023 + $0x10] sm:$0xff]
        %v2027 = vld [vmem:[%s2023 + $0x18] sm:$0xff]
        %v2028 = vld [vmem:[%s2023 + $0x20] sm:$0xff]
        %v2029 = vld [vmem:[%s2023 + $0x28] sm:$0xff]
        %v2030 = vld [vmem:[%s2023 + $0x30] sm:$0xff]
        %v2031 = vld [vmem:[%s2023 + $0x38] sm:$0xff]
        %v2033 = vrot.slane %v2013, 1
        %vm2034 = vcmask 523264
        %v2035 = vsel %vm2034, %v2033, 0
        %2037 = vmatprep.subr.mxu0 0.0
        %2038 = vmatpush1.msra.mxu0 %v2024
        %2039 = vmatprep.subr.mxu0 0.0
        %2040 = vmatpush1.msra.mxu0 %v2025
        %2041 = vmatprep.subr.mxu0 0.0
        %2042 = vmatpush1.msra.mxu0 %v2026
        %2043 = vmatprep.subr.mxu0 0.0
        %2044 = vmatpush1.msra.mxu0 %v2027
        %2045 = vmatprep.subr.mxu0 0.0
        %2046 = vmatpush1.msra.mxu0 %v2028
        %2047 = vmatprep.subr.mxu0 0.0
        %2048 = vmatpush1.msra.mxu0 %v2029
        %2049 = vmatprep.subr.mxu0 0.0
        %2050 = vmatpush1.msra.mxu0 %v2030
        %2051 = vmatprep.subr.mxu0 0.0
        %2052 = vmatpush1.msra.mxu0 %v2031
        %2053 = vmatprep.subr.mxu0 0.0
        %2054 = vmatpush1.msra.mxu0 0.0
        %2055 = vmatprep.subr.mxu0 0.0
        %2056 = vmatpush1.msra.mxu0 0.0
        %2057 = vmatprep.subr.mxu0 0.0
        %2058 = vmatpush1.msra.mxu0 0.0
        %2059 = vmatprep.subr.mxu0 0.0
        %2060 = vmatpush1.msra.mxu0 0.0
        %2061 = vmatprep.subr.mxu0 0.0
        %2062 = vmatpush1.msra.mxu0 0.0
        %2063 = vmatprep.subr.mxu0 0.0
        %2064 = vmatpush1.msra.mxu0 0.0
        %2065 = vmatprep.subr.mxu0 0.0
        %2066 = vmatpush1.msra.mxu0 0.0
        %2067 = vmatprep.subr.mxu0 0.0
        %2068 = vmatpush1.msra.mxu0 0.0
        %2069 = vmatprep.subr.mxu0 0.0
        %2070 = vmatpush1.msra.mxu0 0.0
        %2071 = vmatprep.subr.mxu0 0.0
        %2072 = vmatpush1.msra.mxu0 0.0
        %2073 = vmatprep.subr.mxu0 0.0
        %2074 = vmatpush1.msra.mxu0 0.0
        %2075 = vmatprep.subr.mxu0 0.0
        %2076 = vmatpush1.msra.mxu0 0.0
        %2077 = vmatprep.subr.mxu0 0.0
        %2078 = vmatpush1.msra.mxu0 0.0
        %2079 = vmatprep.subr.mxu0 0.0
        %2080 = vmatpush1.msra.mxu0 0.0
        %2081 = vmatprep.subr.mxu0 0.0
        %2082 = vmatpush1.msra.mxu0 0.0
        %2083 = vmatprep.subr.mxu0 0.0
        %2084 = vmatpush1.msra.mxu0 0.0
        %2085 = vmatprep.subr.mxu0 0.0
        %2086 = vmatpush1.msra.mxu0 0.0
        %2087 = vmatprep.subr.mxu0 0.0
        %2088 = vmatpush1.msra.mxu0 0.0
        %2089 = vmatprep.subr.mxu0 0.0
        %2090 = vmatpush1.msra.mxu0 0.0
        %2091 = vmatprep.subr.mxu0 0.0
        %2092 = vmatpush1.msra.mxu0 0.0
        %2093 = vmatprep.subr.mxu0 0.0
        %2094 = vmatpush1.msra.mxu0 0.0
        %2095 = vmatprep.subr.mxu0 0.0
        %2096 = vmatpush1.msra.mxu0 0.0
        %2097 = vmatprep.subr.mxu0 0.0
        %2098 = vmatpush1.msra.mxu0 0.0
        %2099 = vmatprep.subr.mxu0 0.0
        %2100 = vmatpush1.msra.mxu0 0.0
        %2101 = vmatprep.mubr.f32.mxu0 0.0
        %2102 = vmatmul.mubr.f32.gmra.mrb[0].mxu0 %v2035
        %v2103 = vpop.f32.mrb[0].mxu0
        %v2104 = vadd.f32 0.0, %v2103
        %v2105 = vpop.f32.mrb[0].mxu0
        %2106 = vdwg.mxu0
        %v2107 = vsel %vm2034, %v2013, 0
        %2109 = vmatprep.subr.mxu0 0.0
        %2110 = vmatpush1.msra.mxu0 %v2015
        %2111 = vmatprep.subr.mxu0 0.0
        %2112 = vmatpush1.msra.mxu0 %v2016
        %2113 = vmatprep.subr.mxu0 0.0
        %2114 = vmatpush1.msra.mxu0 %v2017
        %2115 = vmatprep.subr.mxu0 0.0
        %2116 = vmatpush1.msra.mxu0 %v2018
        %2117 = vmatprep.subr.mxu0 0.0
        %2118 = vmatpush1.msra.mxu0 %v2019
        %2119 = vmatprep.subr.mxu0 0.0
        %2120 = vmatpush1.msra.mxu0 %v2020
        %2121 = vmatprep.subr.mxu0 0.0
        %2122 = vmatpush1.msra.mxu0 %v2021
        %2123 = vmatprep.subr.mxu0 0.0
        %2124 = vmatpush1.msra.mxu0 %v2022
        %2125 = vmatprep.subr.mxu0 0.0
        %2126 = vmatpush1.msra.mxu0 0.0
        %2127 = vmatprep.subr.mxu0 0.0
        %2128 = vmatpush1.msra.mxu0 0.0
        %2129 = vmatprep.subr.mxu0 0.0
        %2130 = vmatpush1.msra.mxu0 0.0
        %2131 = vmatprep.subr.mxu0 0.0
        %2132 = vmatpush1.msra.mxu0 0.0
        %2133 = vmatprep.subr.mxu0 0.0
        %2134 = vmatpush1.msra.mxu0 0.0
        %2135 = vmatprep.subr.mxu0 0.0
        %2136 = vmatpush1.msra.mxu0 0.0
        %2137 = vmatprep.subr.mxu0 0.0
        %2138 = vmatpush1.msra.mxu0 0.0
        %2139 = vmatprep.subr.mxu0 0.0
        %2140 = vmatpush1.msra.mxu0 0.0
        %2141 = vmatprep.subr.mxu0 0.0
        %2142 = vmatpush1.msra.mxu0 0.0
        %2143 = vmatprep.subr.mxu0 0.0
        %2144 = vmatpush1.msra.mxu0 0.0
        %2145 = vmatprep.subr.mxu0 0.0
        %2146 = vmatpush1.msra.mxu0 0.0
        %2147 = vmatprep.subr.mxu0 0.0
        %2148 = vmatpush1.msra.mxu0 0.0
        %2149 = vmatprep.subr.mxu0 0.0
        %2150 = vmatpush1.msra.mxu0 0.0
        %2151 = vmatprep.subr.mxu0 0.0
        %2152 = vmatpush1.msra.mxu0 0.0
        %2153 = vmatprep.subr.mxu0 0.0
        %2154 = vmatpush1.msra.mxu0 0.0
        %2155 = vmatprep.subr.mxu0 0.0
        %2156 = vmatpush1.msra.mxu0 0.0
        %2157 = vmatprep.subr.mxu0 0.0
        %2158 = vmatpush1.msra.mxu0 0.0
        %2159 = vmatprep.subr.mxu0 0.0
        %2160 = vmatpush1.msra.mxu0 0.0
        %2161 = vmatprep.subr.mxu0 0.0
        %2162 = vmatpush1.msra.mxu0 0.0
        %2163 = vmatprep.subr.mxu0 0.0
        %2164 = vmatpush1.msra.mxu0 0.0
        %2165 = vmatprep.subr.mxu0 0.0
        %2166 = vmatpush1.msra.mxu0 0.0
        %2167 = vmatprep.subr.mxu0 0.0
        %2168 = vmatpush1.msra.mxu0 0.0
        %2169 = vmatprep.subr.mxu0 0.0
        %2170 = vmatpush1.msra.mxu0 0.0
        %2171 = vmatprep.subr.mxu0 0.0
        %2172 = vmatpush1.msra.mxu0 0.0
        %2173 = vmatprep.mubr.f32.mxu0 0.0
        %2174 = vmatmul.mubr.f32.gmra.mrb[0].mxu0 %v2107
        %v2175 = vpop.f32.mrb[0].mxu0
        %v2176 = vadd.f32 %v2104, %v2175
        %v2177 = vpop.f32.mrb[0].mxu0
        %2178 = vdwg.mxu0
        %s2179 = scalar_lea.vmem %s6, 128
        %v2180 = vld [vmem:[%s2179] sm:$0xff]
        %v2181 = vld [vmem:[%s2179 + $0x8] sm:$0xff]
        %v2182 = vld [vmem:[%s2179 + $0x10] sm:$0xff]
        %v2183 = vld [vmem:[%s2179 + $0x18] sm:$0xff]
        %v2184 = vld [vmem:[%s2179 + $0x20] sm:$0xff]
        %v2185 = vld [vmem:[%s2179 + $0x28] sm:$0xff]
        %v2186 = vld [vmem:[%s2179 + $0x30] sm:$0xff]
        %v2187 = vld [vmem:[%s2179 + $0x38] sm:$0xff]
        %v2188 = vrot.slane %v2013, 2
        %v2189 = vsel %vm2034, %v2188, 0
        %2191 = vmatprep.subr.mxu0 0.0
        %2192 = vmatpush1.msra.mxu0 %v2180
        %2193 = vmatprep.subr.mxu0 0.0
        %2194 = vmatpush1.msra.mxu0 %v2181
        %2195 = vmatprep.subr.mxu0 0.0
        %2196 = vmatpush1.msra.mxu0 %v2182
        %2197 = vmatprep.subr.mxu0 0.0
        %2198 = vmatpush1.msra.mxu0 %v2183
        %2199 = vmatprep.subr.mxu0 0.0
        %2200 = vmatpush1.msra.mxu0 %v2184
        %2201 = vmatprep.subr.mxu0 0.0
        %2202 = vmatpush1.msra.mxu0 %v2185
        %2203 = vmatprep.subr.mxu0 0.0
        %2204 = vmatpush1.msra.mxu0 %v2186
        %2205 = vmatprep.subr.mxu0 0.0
        %2206 = vmatpush1.msra.mxu0 %v2187
        %2207 = vmatprep.subr.mxu0 0.0
        %2208 = vmatpush1.msra.mxu0 0.0
        %2209 = vmatprep.subr.mxu0 0.0
        %2210 = vmatpush1.msra.mxu0 0.0
        %2211 = vmatprep.subr.mxu0 0.0
        %2212 = vmatpush1.msra.mxu0 0.0
        %2213 = vmatprep.subr.mxu0 0.0
        %2214 = vmatpush1.msra.mxu0 0.0
        %2215 = vmatprep.subr.mxu0 0.0
        %2216 = vmatpush1.msra.mxu0 0.0
        %2217 = vmatprep.subr.mxu0 0.0
        %2218 = vmatpush1.msra.mxu0 0.0
        %2219 = vmatprep.subr.mxu0 0.0
        %2220 = vmatpush1.msra.mxu0 0.0
        %2221 = vmatprep.subr.mxu0 0.0
        %2222 = vmatpush1.msra.mxu0 0.0
        %2223 = vmatprep.subr.mxu0 0.0
        %2224 = vmatpush1.msra.mxu0 0.0
        %2225 = vmatprep.subr.mxu0 0.0
        %2226 = vmatpush1.msra.mxu0 0.0
        %2227 = vmatprep.subr.mxu0 0.0
        %2228 = vmatpush1.msra.mxu0 0.0
        %2229 = vmatprep.subr.mxu0 0.0
        %2230 = vmatpush1.msra.mxu0 0.0
        %2231 = vmatprep.subr.mxu0 0.0
        %2232 = vmatpush1.msra.mxu0 0.0
        %2233 = vmatprep.subr.mxu0 0.0
        %2234 = vmatpush1.msra.mxu0 0.0
        %2235 = vmatprep.subr.mxu0 0.0
        %2236 = vmatpush1.msra.mxu0 0.0
        %2237 = vmatprep.subr.mxu0 0.0
        %2238 = vmatpush1.msra.mxu0 0.0
        %2239 = vmatprep.subr.mxu0 0.0
        %2240 = vmatpush1.msra.mxu0 0.0
        %2241 = vmatprep.subr.mxu0 0.0
        %2242 = vmatpush1.msra.mxu0 0.0
        %2243 = vmatprep.subr.mxu0 0.0
        %2244 = vmatpush1.msra.mxu0 0.0
        %2245 = vmatprep.subr.mxu0 0.0
        %2246 = vmatpush1.msra.mxu0 0.0
        %2247 = vmatprep.subr.mxu0 0.0
        %2248 = vmatpush1.msra.mxu0 0.0
        %2249 = vmatprep.subr.mxu0 0.0
        %2250 = vmatpush1.msra.mxu0 0.0
        %2251 = vmatprep.subr.mxu0 0.0
        %2252 = vmatpush1.msra.mxu0 0.0
        %2253 = vmatprep.subr.mxu0 0.0
        %2254 = vmatpush1.msra.mxu0 0.0
        %2255 = vmatprep.mubr.f32.mxu0 0.0
        %2256 = vmatmul.mubr.f32.gmra.mrb[0].mxu0 %v2189
        %v2257 = vpop.f32.mrb[0].mxu0
        %v2258 = vadd.f32 0.0, %v2257
        %v2259 = vpop.f32.mrb[0].mxu0
        %2260 = vdwg.mxu0
        %v2261 = vadd.f32 %v2176, %v2258
        %s2262 = scalar_lea.vmem %s6, 192
        %v2263 = vld [vmem:[%s2262] sm:$0xff]
        %v2264 = vld [vmem:[%s2262 + $0x8] sm:$0xff]
        %v2265 = vld [vmem:[%s2262 + $0x10] sm:$0xff]
        %v2266 = vld [vmem:[%s2262 + $0x18] sm:$0xff]
        %v2267 = vld [vmem:[%s2262 + $0x20] sm:$0xff]
        %v2268 = vld [vmem:[%s2262 + $0x28] sm:$0xff]
        %v2269 = vld [vmem:[%s2262 + $0x30] sm:$0xff]
        %v2270 = vld [vmem:[%s2262 + $0x38] sm:$0xff]
        %v2271 = vrot.slane %v2013, 3
        %v2272 = vsel %vm2034, %v2271, 0
        %2274 = vmatprep.subr.mxu0 0.0
        %2275 = vmatpush1.msra.mxu0 %v2263
        %2276 = vmatprep.subr.mxu0 0.0
        %2277 = vmatpush1.msra.mxu0 %v2264
        %2278 = vmatprep.subr.mxu0 0.0
        %2279 = vmatpush1.msra.mxu0 %v2265
        %2280 = vmatprep.subr.mxu0 0.0
        %2281 = vmatpush1.msra.mxu0 %v2266
        %2282 = vmatprep.subr.mxu0 0.0
        %2283 = vmatpush1.msra.mxu0 %v2267
        %2284 = vmatprep.subr.mxu0 0.0
        %2285 = vmatpush1.msra.mxu0 %v2268
        %2286 = vmatprep.subr.mxu0 0.0
        %2287 = vmatpush1.msra.mxu0 %v2269
        %2288 = vmatprep.subr.mxu0 0.0
        %2289 = vmatpush1.msra.mxu0 %v2270
        %2290 = vmatprep.subr.mxu0 0.0
        %2291 = vmatpush1.msra.mxu0 0.0
        %2292 = vmatprep.subr.mxu0 0.0
        %2293 = vmatpush1.msra.mxu0 0.0
        %2294 = vmatprep.subr.mxu0 0.0
        %2295 = vmatpush1.msra.mxu0 0.0
        %2296 = vmatprep.subr.mxu0 0.0
        %2297 = vmatpush1.msra.mxu0 0.0
        %2298 = vmatprep.subr.mxu0 0.0
        %2299 = vmatpush1.msra.mxu0 0.0
        %2300 = vmatprep.subr.mxu0 0.0
        %2301 = vmatpush1.msra.mxu0 0.0
        %2302 = vmatprep.subr.mxu0 0.0
        %2303 = vmatpush1.msra.mxu0 0.0
        %2304 = vmatprep.subr.mxu0 0.0
        %2305 = vmatpush1.msra.mxu0 0.0
        %2306 = vmatprep.subr.mxu0 0.0
        %2307 = vmatpush1.msra.mxu0 0.0
        %2308 = vmatprep.subr.mxu0 0.0
        %2309 = vmatpush1.msra.mxu0 0.0
        %2310 = vmatprep.subr.mxu0 0.0
        %2311 = vmatpush1.msra.mxu0 0.0
        %2312 = vmatprep.subr.mxu0 0.0
        %2313 = vmatpush1.msra.mxu0 0.0
        %2314 = vmatprep.subr.mxu0 0.0
        %2315 = vmatpush1.msra.mxu0 0.0
        %2316 = vmatprep.subr.mxu0 0.0
        %2317 = vmatpush1.msra.mxu0 0.0
        %2318 = vmatprep.subr.mxu0 0.0
        %2319 = vmatpush1.msra.mxu0 0.0
        %2320 = vmatprep.subr.mxu0 0.0
        %2321 = vmatpush1.msra.mxu0 0.0
        %2322 = vmatprep.subr.mxu0 0.0
        %2323 = vmatpush1.msra.mxu0 0.0
        %2324 = vmatprep.subr.mxu0 0.0
        %2325 = vmatpush1.msra.mxu0 0.0
        %2326 = vmatprep.subr.mxu0 0.0
        %2327 = vmatpush1.msra.mxu0 0.0
        %2328 = vmatprep.subr.mxu0 0.0
        %2329 = vmatpush1.msra.mxu0 0.0
        %2330 = vmatprep.subr.mxu0 0.0
        %2331 = vmatpush1.msra.mxu0 0.0
        %2332 = vmatprep.subr.mxu0 0.0
        %2333 = vmatpush1.msra.mxu0 0.0
        %2334 = vmatprep.subr.mxu0 0.0
        %2335 = vmatpush1.msra.mxu0 0.0
        %2336 = vmatprep.subr.mxu0 0.0
        %2337 = vmatpush1.msra.mxu0 0.0
        %2338 = vmatprep.mubr.f32.mxu0 0.0
        %2339 = vmatmul.mubr.f32.gmra.mrb[0].mxu0 %v2272
        %v2340 = vpop.f32.mrb[0].mxu0
        %v2341 = vadd.f32 0.0, %v2340
        %v2342 = vpop.f32.mrb[0].mxu0
        %2343 = vdwg.mxu0
        %v2344 = vadd.f32 %v2261, %v2341
        %s2345 = scalar_lea.vmem %s6, 256
        %v2346 = vld [vmem:[%s2345] sm:$0xff]
        %v2347 = vld [vmem:[%s2345 + $0x8] sm:$0xff]
        %v2348 = vld [vmem:[%s2345 + $0x10] sm:$0xff]
        %v2349 = vld [vmem:[%s2345 + $0x18] sm:$0xff]
        %v2350 = vld [vmem:[%s2345 + $0x20] sm:$0xff]
        %v2351 = vld [vmem:[%s2345 + $0x28] sm:$0xff]
        %v2352 = vld [vmem:[%s2345 + $0x30] sm:$0xff]
        %v2353 = vld [vmem:[%s2345 + $0x38] sm:$0xff]
        %v2354 = vrot.slane %v2013, 4
        %v2355 = vsel %vm2034, %v2354, 0
        %2357 = vmatprep.subr.mxu0 0.0
        %2358 = vmatpush1.msra.mxu0 %v2346
        %2359 = vmatprep.subr.mxu0 0.0
        %2360 = vmatpush1.msra.mxu0 %v2347
        %2361 = vmatprep.subr.mxu0 0.0
        %2362 = vmatpush1.msra.mxu0 %v2348
        %2363 = vmatprep.subr.mxu0 0.0
        %2364 = vmatpush1.msra.mxu0 %v2349
        %2365 = vmatprep.subr.mxu0 0.0
        %2366 = vmatpush1.msra.mxu0 %v2350
        %2367 = vmatprep.subr.mxu0 0.0
        %2368 = vmatpush1.msra.mxu0 %v2351
        %2369 = vmatprep.subr.mxu0 0.0
        %2370 = vmatpush1.msra.mxu0 %v2352
        %2371 = vmatprep.subr.mxu0 0.0
        %2372 = vmatpush1.msra.mxu0 %v2353
        %2373 = vmatprep.subr.mxu0 0.0
        %2374 = vmatpush1.msra.mxu0 0.0
        %2375 = vmatprep.subr.mxu0 0.0
        %2376 = vmatpush1.msra.mxu0 0.0
        %2377 = vmatprep.subr.mxu0 0.0
        %2378 = vmatpush1.msra.mxu0 0.0
        %2379 = vmatprep.subr.mxu0 0.0
        %2380 = vmatpush1.msra.mxu0 0.0
        %2381 = vmatprep.subr.mxu0 0.0
        %2382 = vmatpush1.msra.mxu0 0.0
        %2383 = vmatprep.subr.mxu0 0.0
        %2384 = vmatpush1.msra.mxu0 0.0
        %2385 = vmatprep.subr.mxu0 0.0
        %2386 = vmatpush1.msra.mxu0 0.0
        %2387 = vmatprep.subr.mxu0 0.0
        %2388 = vmatpush1.msra.mxu0 0.0
        %2389 = vmatprep.subr.mxu0 0.0
        %2390 = vmatpush1.msra.mxu0 0.0
        %2391 = vmatprep.subr.mxu0 0.0
        %2392 = vmatpush1.msra.mxu0 0.0
        %2393 = vmatprep.subr.mxu0 0.0
        %2394 = vmatpush1.msra.mxu0 0.0
        %2395 = vmatprep.subr.mxu0 0.0
        %2396 = vmatpush1.msra.mxu0 0.0
        %2397 = vmatprep.subr.mxu0 0.0
        %2398 = vmatpush1.msra.mxu0 0.0
        %2399 = vmatprep.subr.mxu0 0.0
        %2400 = vmatpush1.msra.mxu0 0.0
        %2401 = vmatprep.subr.mxu0 0.0
        %2402 = vmatpush1.msra.mxu0 0.0
        %2403 = vmatprep.subr.mxu0 0.0
        %2404 = vmatpush1.msra.mxu0 0.0
        %2405 = vmatprep.subr.mxu0 0.0
        %2406 = vmatpush1.msra.mxu0 0.0
        %2407 = vmatprep.subr.mxu0 0.0
        %2408 = vmatpush1.msra.mxu0 0.0
        %2409 = vmatprep.subr.mxu0 0.0
        %2410 = vmatpush1.msra.mxu0 0.0
        %2411 = vmatprep.subr.mxu0 0.0
        %2412 = vmatpush1.msra.mxu0 0.0
        %2413 = vmatprep.subr.mxu0 0.0
        %2414 = vmatpush1.msra.mxu0 0.0
        %2415 = vmatprep.subr.mxu0 0.0
        %2416 = vmatpush1.msra.mxu0 0.0
        %2417 = vmatprep.subr.mxu0 0.0
        %2418 = vmatpush1.msra.mxu0 0.0
        %2419 = vmatprep.subr.mxu0 0.0
        %2420 = vmatpush1.msra.mxu0 0.0
        %2421 = vmatprep.mubr.f32.mxu0 0.0
        %2422 = vmatmul.mubr.f32.gmra.mrb[0].mxu0 %v2355
        %v2423 = vpop.f32.mrb[0].mxu0
        %v2424 = vadd.f32 0.0, %v2423
        %v2425 = vpop.f32.mrb[0].mxu0
        %2426 = vdwg.mxu0
        %v2427 = vadd.f32 %v2344, %v2424
        %s2428 = scalar_lea.vmem %s6, 320
        %v2429 = vld [vmem:[%s2428] sm:$0xff]
        %v2430 = vld [vmem:[%s2428 + $0x8] sm:$0xff]
        %v2431 = vld [vmem:[%s2428 + $0x10] sm:$0xff]
        %v2432 = vld [vmem:[%s2428 + $0x18] sm:$0xff]
        %v2433 = vld [vmem:[%s2428 + $0x20] sm:$0xff]
        %v2434 = vld [vmem:[%s2428 + $0x28] sm:$0xff]
        %v2435 = vld [vmem:[%s2428 + $0x30] sm:$0xff]
        %v2436 = vld [vmem:[%s2428 + $0x38] sm:$0xff]
        %v2437 = vrot.slane %v2013, 5
        %v2438 = vsel %vm2034, %v2437, 0
        %2440 = vmatprep.subr.mxu0 0.0
        %2441 = vmatpush1.msra.mxu0 %v2429
        %2442 = vmatprep.subr.mxu0 0.0
        %2443 = vmatpush1.msra.mxu0 %v2430
        %2444 = vmatprep.subr.mxu0 0.0
        %2445 = vmatpush1.msra.mxu0 %v2431
        %2446 = vmatprep.subr.mxu0 0.0
        %2447 = vmatpush1.msra.mxu0 %v2432
        %2448 = vmatprep.subr.mxu0 0.0
        %2449 = vmatpush1.msra.mxu0 %v2433
        %2450 = vmatprep.subr.mxu0 0.0
        %2451 = vmatpush1.msra.mxu0 %v2434
        %2452 = vmatprep.subr.mxu0 0.0
        %2453 = vmatpush1.msra.mxu0 %v2435
        %2454 = vmatprep.subr.mxu0 0.0
        %2455 = vmatpush1.msra.mxu0 %v2436
        %2456 = vmatprep.subr.mxu0 0.0
        %2457 = vmatpush1.msra.mxu0 0.0
        %2458 = vmatprep.subr.mxu0 0.0
        %2459 = vmatpush1.msra.mxu0 0.0
        %2460 = vmatprep.subr.mxu0 0.0
        %2461 = vmatpush1.msra.mxu0 0.0
        %2462 = vmatprep.subr.mxu0 0.0
        %2463 = vmatpush1.msra.mxu0 0.0
        %2464 = vmatprep.subr.mxu0 0.0
        %2465 = vmatpush1.msra.mxu0 0.0
        %2466 = vmatprep.subr.mxu0 0.0
        %2467 = vmatpush1.msra.mxu0 0.0
        %2468 = vmatprep.subr.mxu0 0.0
        %2469 = vmatpush1.msra.mxu0 0.0
        %2470 = vmatprep.subr.mxu0 0.0
        %2471 = vmatpush1.msra.mxu0 0.0
        %2472 = vmatprep.subr.mxu0 0.0
        %2473 = vmatpush1.msra.mxu0 0.0
        %2474 = vmatprep.subr.mxu0 0.0
        %2475 = vmatpush1.msra.mxu0 0.0
        %2476 = vmatprep.subr.mxu0 0.0
        %2477 = vmatpush1.msra.mxu0 0.0
        %2478 = vmatprep.subr.mxu0 0.0
        %2479 = vmatpush1.msra.mxu0 0.0
        %2480 = vmatprep.subr.mxu0 0.0
        %2481 = vmatpush1.msra.mxu0 0.0
        %2482 = vmatprep.subr.mxu0 0.0
        %2483 = vmatpush1.msra.mxu0 0.0
        %2484 = vmatprep.subr.mxu0 0.0
        %2485 = vmatpush1.msra.mxu0 0.0
        %2486 = vmatprep.subr.mxu0 0.0
        %2487 = vmatpush1.msra.mxu0 0.0
        %2488 = vmatprep.subr.mxu0 0.0
        %2489 = vmatpush1.msra.mxu0 0.0
        %2490 = vmatprep.subr.mxu0 0.0
        %2491 = vmatpush1.msra.mxu0 0.0
        %2492 = vmatprep.subr.mxu0 0.0
        %2493 = vmatpush1.msra.mxu0 0.0
        %2494 = vmatprep.subr.mxu0 0.0
        %2495 = vmatpush1.msra.mxu0 0.0
        %2496 = vmatprep.subr.mxu0 0.0
        %2497 = vmatpush1.msra.mxu0 0.0
        %2498 = vmatprep.subr.mxu0 0.0
        %2499 = vmatpush1.msra.mxu0 0.0
        %2500 = vmatprep.subr.mxu0 0.0
        %2501 = vmatpush1.msra.mxu0 0.0
        %2502 = vmatprep.subr.mxu0 0.0
        %2503 = vmatpush1.msra.mxu0 0.0
        %2504 = vmatprep.mubr.f32.mxu0 0.0
        %2505 = vmatmul.mubr.f32.gmra.mrb[0].mxu0 %v2438
        %v2506 = vpop.f32.mrb[0].mxu0
        %v2507 = vadd.f32 0.0, %v2506
        %v2508 = vpop.f32.mrb[0].mxu0
        %2509 = vdwg.mxu0
        %v2510 = vadd.f32 %v2427, %v2507
        %s2511 = scalar_lea.vmem %s6, 384
        %v2512 = vld [vmem:[%s2511] sm:$0xff]
        %v2513 = vld [vmem:[%s2511 + $0x8] sm:$0xff]
        %v2514 = vld [vmem:[%s2511 + $0x10] sm:$0xff]
        %v2515 = vld [vmem:[%s2511 + $0x18] sm:$0xff]
        %v2516 = vld [vmem:[%s2511 + $0x20] sm:$0xff]
        %v2517 = vld [vmem:[%s2511 + $0x28] sm:$0xff]
        %v2518 = vld [vmem:[%s2511 + $0x30] sm:$0xff]
        %v2519 = vld [vmem:[%s2511 + $0x38] sm:$0xff]
        %v2520 = vrot.slane %v2013, 6
        %v2521 = vsel %vm2034, %v2520, 0
        %2523 = vmatprep.subr.mxu0 0.0
        %2524 = vmatpush1.msra.mxu0 %v2512
        %2525 = vmatprep.subr.mxu0 0.0
        %2526 = vmatpush1.msra.mxu0 %v2513
        %2527 = vmatprep.subr.mxu0 0.0
        %2528 = vmatpush1.msra.mxu0 %v2514
        %2529 = vmatprep.subr.mxu0 0.0
        %2530 = vmatpush1.msra.mxu0 %v2515
        %2531 = vmatprep.subr.mxu0 0.0
        %2532 = vmatpush1.msra.mxu0 %v2516
        %2533 = vmatprep.subr.mxu0 0.0
        %2534 = vmatpush1.msra.mxu0 %v2517
        %2535 = vmatprep.subr.mxu0 0.0
        %2536 = vmatpush1.msra.mxu0 %v2518
        %2537 = vmatprep.subr.mxu0 0.0
        %2538 = vmatpush1.msra.mxu0 %v2519
        %2539 = vmatprep.subr.mxu0 0.0
        %2540 = vmatpush1.msra.mxu0 0.0
        %2541 = vmatprep.subr.mxu0 0.0
        %2542 = vmatpush1.msra.mxu0 0.0
        %2543 = vmatprep.subr.mxu0 0.0
        %2544 = vmatpush1.msra.mxu0 0.0
        %2545 = vmatprep.subr.mxu0 0.0
        %2546 = vmatpush1.msra.mxu0 0.0
        %2547 = vmatprep.subr.mxu0 0.0
        %2548 = vmatpush1.msra.mxu0 0.0
        %2549 = vmatprep.subr.mxu0 0.0
        %2550 = vmatpush1.msra.mxu0 0.0
        %2551 = vmatprep.subr.mxu0 0.0
        %2552 = vmatpush1.msra.mxu0 0.0
        %2553 = vmatprep.subr.mxu0 0.0
        %2554 = vmatpush1.msra.mxu0 0.0
        %2555 = vmatprep.subr.mxu0 0.0
        %2556 = vmatpush1.msra.mxu0 0.0
        %2557 = vmatprep.subr.mxu0 0.0
        %2558 = vmatpush1.msra.mxu0 0.0
        %2559 = vmatprep.subr.mxu0 0.0
        %2560 = vmatpush1.msra.mxu0 0.0
        %2561 = vmatprep.subr.mxu0 0.0
        %2562 = vmatpush1.msra.mxu0 0.0
        %2563 = vmatprep.subr.mxu0 0.0
        %2564 = vmatpush1.msra.mxu0 0.0
        %2565 = vmatprep.subr.mxu0 0.0
        %2566 = vmatpush1.msra.mxu0 0.0
        %2567 = vmatprep.subr.mxu0 0.0
        %2568 = vmatpush1.msra.mxu0 0.0
        %2569 = vmatprep.subr.mxu0 0.0
        %2570 = vmatpush1.msra.mxu0 0.0
        %2571 = vmatprep.subr.mxu0 0.0
        %2572 = vmatpush1.msra.mxu0 0.0
        %2573 = vmatprep.subr.mxu0 0.0
        %2574 = vmatpush1.msra.mxu0 0.0
        %2575 = vmatprep.subr.mxu0 0.0
        %2576 = vmatpush1.msra.mxu0 0.0
        %2577 = vmatprep.subr.mxu0 0.0
        %2578 = vmatpush1.msra.mxu0 0.0
        %2579 = vmatprep.subr.mxu0 0.0
        %2580 = vmatpush1.msra.mxu0 0.0
        %2581 = vmatprep.subr.mxu0 0.0
        %2582 = vmatpush1.msra.mxu0 0.0
        %2583 = vmatprep.subr.mxu0 0.0
        %2584 = vmatpush1.msra.mxu0 0.0
        %2585 = vmatprep.subr.mxu0 0.0
        %2586 = vmatpush1.msra.mxu0 0.0
        %2587 = vmatprep.mubr.f32.mxu0 0.0
        %2588 = vmatmul.mubr.f32.gmra.mrb[0].mxu0 %v2521
        %v2589 = vpop.f32.mrb[0].mxu0
        %v2590 = vadd.f32 0.0, %v2589
        %v2591 = vpop.f32.mrb[0].mxu0
        %2592 = vdwg.mxu0
        %v2593 = vadd.f32 %v2510, %v2590
        %s2594 = scalar_lea.vmem %s6, 448
        %v2595 = vld [vmem:[%s2594] sm:$0xff]
        %v2596 = vld [vmem:[%s2594 + $0x8] sm:$0xff]
        %v2597 = vld [vmem:[%s2594 + $0x10] sm:$0xff]
        %v2598 = vld [vmem:[%s2594 + $0x18] sm:$0xff]
        %v2599 = vld [vmem:[%s2594 + $0x20] sm:$0xff]
        %v2600 = vld [vmem:[%s2594 + $0x28] sm:$0xff]
        %v2601 = vld [vmem:[%s2594 + $0x30] sm:$0xff]
        %v2602 = vld [vmem:[%s2594 + $0x38] sm:$0xff]
        %v2603 = vrot.slane %v2013, 7
        %v2604 = vsel %vm2034, %v2603, 0
        %2606 = vmatprep.subr.mxu0 0.0
        %2607 = vmatpush1.msra.mxu0 %v2595
        %2608 = vmatprep.subr.mxu0 0.0
        %2609 = vmatpush1.msra.mxu0 %v2596
        %2610 = vmatprep.subr.mxu0 0.0
        %2611 = vmatpush1.msra.mxu0 %v2597
        %2612 = vmatprep.subr.mxu0 0.0
        %2613 = vmatpush1.msra.mxu0 %v2598
        %2614 = vmatprep.subr.mxu0 0.0
        %2615 = vmatpush1.msra.mxu0 %v2599
        %2616 = vmatprep.subr.mxu0 0.0
        %2617 = vmatpush1.msra.mxu0 %v2600
        %2618 = vmatprep.subr.mxu0 0.0
        %2619 = vmatpush1.msra.mxu0 %v2601
        %2620 = vmatprep.subr.mxu0 0.0
        %2621 = vmatpush1.msra.mxu0 %v2602
        %2622 = vmatprep.subr.mxu0 0.0
        %2623 = vmatpush1.msra.mxu0 0.0
        %2624 = vmatprep.subr.mxu0 0.0
        %2625 = vmatpush1.msra.mxu0 0.0
        %2626 = vmatprep.subr.mxu0 0.0
        %2627 = vmatpush1.msra.mxu0 0.0
        %2628 = vmatprep.subr.mxu0 0.0
        %2629 = vmatpush1.msra.mxu0 0.0
        %2630 = vmatprep.subr.mxu0 0.0
        %2631 = vmatpush1.msra.mxu0 0.0
        %2632 = vmatprep.subr.mxu0 0.0
        %2633 = vmatpush1.msra.mxu0 0.0
        %2634 = vmatprep.subr.mxu0 0.0
        %2635 = vmatpush1.msra.mxu0 0.0
        %2636 = vmatprep.subr.mxu0 0.0
        %2637 = vmatpush1.msra.mxu0 0.0
        %2638 = vmatprep.subr.mxu0 0.0
        %2639 = vmatpush1.msra.mxu0 0.0
        %2640 = vmatprep.subr.mxu0 0.0
        %2641 = vmatpush1.msra.mxu0 0.0
        %2642 = vmatprep.subr.mxu0 0.0
        %2643 = vmatpush1.msra.mxu0 0.0
        %2644 = vmatprep.subr.mxu0 0.0
        %2645 = vmatpush1.msra.mxu0 0.0
        %2646 = vmatprep.subr.mxu0 0.0
        %2647 = vmatpush1.msra.mxu0 0.0
        %2648 = vmatprep.subr.mxu0 0.0
        %2649 = vmatpush1.msra.mxu0 0.0
        %2650 = vmatprep.subr.mxu0 0.0
        %2651 = vmatpush1.msra.mxu0 0.0
        %2652 = vmatprep.subr.mxu0 0.0
        %2653 = vmatpush1.msra.mxu0 0.0
        %2654 = vmatprep.subr.mxu0 0.0
        %2655 = vmatpush1.msra.mxu0 0.0
        %2656 = vmatprep.subr.mxu0 0.0
        %2657 = vmatpush1.msra.mxu0 0.0
        %2658 = vmatprep.subr.mxu0 0.0
        %2659 = vmatpush1.msra.mxu0 0.0
        %2660 = vmatprep.subr.mxu0 0.0
        %2661 = vmatpush1.msra.mxu0 0.0
        %2662 = vmatprep.subr.mxu0 0.0
        %2663 = vmatpush1.msra.mxu0 0.0
        %2664 = vmatprep.subr.mxu0 0.0
        %2665 = vmatpush1.msra.mxu0 0.0
        %2666 = vmatprep.subr.mxu0 0.0
        %2667 = vmatpush1.msra.mxu0 0.0
        %2668 = vmatprep.subr.mxu0 0.0
        %2669 = vmatpush1.msra.mxu0 0.0
        %2670 = vmatprep.mubr.f32.mxu0 0.0
        %2671 = vmatmul.mubr.f32.gmra.mrb[0].mxu0 %v2604
        %v2672 = vpop.f32.mrb[0].mxu0
        %v2673 = vadd.f32 0.0, %v2672
        %v2674 = vpop.f32.mrb[0].mxu0
        %2675 = vdwg.mxu0
        %v2676 = vadd.f32 %v2593, %v2673
        %s2677 = scalar_lea.vmem %s6, 512
        %v2678 = vld [vmem:[%s2677] sm:$0xff]
        %v2679 = vld [vmem:[%s2677 + $0x8] sm:$0xff]
        %v2680 = vld [vmem:[%s2677 + $0x10] sm:$0xff]
        %v2681 = vld [vmem:[%s2677 + $0x18] sm:$0xff]
        %v2682 = vld [vmem:[%s2677 + $0x20] sm:$0xff]
        %v2683 = vld [vmem:[%s2677 + $0x28] sm:$0xff]
        %v2684 = vld [vmem:[%s2677 + $0x30] sm:$0xff]
        %v2685 = vld [vmem:[%s2677 + $0x38] sm:$0xff]
        %v2687 = vsel %vm2034, %v2014, 0
        %2689 = vmatprep.subr.mxu0 0.0
        %2690 = vmatpush1.msra.mxu0 %v2678
        %2691 = vmatprep.subr.mxu0 0.0
        %2692 = vmatpush1.msra.mxu0 %v2679
        %2693 = vmatprep.subr.mxu0 0.0
        %2694 = vmatpush1.msra.mxu0 %v2680
        %2695 = vmatprep.subr.mxu0 0.0
        %2696 = vmatpush1.msra.mxu0 %v2681
        %2697 = vmatprep.subr.mxu0 0.0
        %2698 = vmatpush1.msra.mxu0 %v2682
        %2699 = vmatprep.subr.mxu0 0.0
        %2700 = vmatpush1.msra.mxu0 %v2683
        %2701 = vmatprep.subr.mxu0 0.0
        %2702 = vmatpush1.msra.mxu0 %v2684
        %2703 = vmatprep.subr.mxu0 0.0
        %2704 = vmatpush1.msra.mxu0 %v2685
        %2705 = vmatprep.subr.mxu0 0.0
        %2706 = vmatpush1.msra.mxu0 0.0
        %2707 = vmatprep.subr.mxu0 0.0
        %2708 = vmatpush1.msra.mxu0 0.0
        %2709 = vmatprep.subr.mxu0 0.0
        %2710 = vmatpush1.msra.mxu0 0.0
        %2711 = vmatprep.subr.mxu0 0.0
        %2712 = vmatpush1.msra.mxu0 0.0
        %2713 = vmatprep.subr.mxu0 0.0
        %2714 = vmatpush1.msra.mxu0 0.0
        %2715 = vmatprep.subr.mxu0 0.0
        %2716 = vmatpush1.msra.mxu0 0.0
        %2717 = vmatprep.subr.mxu0 0.0
        %2718 = vmatpush1.msra.mxu0 0.0
        %2719 = vmatprep.subr.mxu0 0.0
        %2720 = vmatpush1.msra.mxu0 0.0
        %2721 = vmatprep.subr.mxu0 0.0
        %2722 = vmatpush1.msra.mxu0 0.0
        %2723 = vmatprep.subr.mxu0 0.0
        %2724 = vmatpush1.msra.mxu0 0.0
        %2725 = vmatprep.subr.mxu0 0.0
        %2726 = vmatpush1.msra.mxu0 0.0
        %2727 = vmatprep.subr.mxu0 0.0
        %2728 = vmatpush1.msra.mxu0 0.0
        %2729 = vmatprep.subr.mxu0 0.0
        %2730 = vmatpush1.msra.mxu0 0.0
        %2731 = vmatprep.subr.mxu0 0.0
        %2732 = vmatpush1.msra.mxu0 0.0
        %2733 = vmatprep.subr.mxu0 0.0
        %2734 = vmatpush1.msra.mxu0 0.0
        %2735 = vmatprep.subr.mxu0 0.0
        %2736 = vmatpush1.msra.mxu0 0.0
        %2737 = vmatprep.subr.mxu0 0.0
        %2738 = vmatpush1.msra.mxu0 0.0
        %2739 = vmatprep.subr.mxu0 0.0
        %2740 = vmatpush1.msra.mxu0 0.0
        %2741 = vmatprep.subr.mxu0 0.0
        %2742 = vmatpush1.msra.mxu0 0.0
        %2743 = vmatprep.subr.mxu0 0.0
        %2744 = vmatpush1.msra.mxu0 0.0
        %2745 = vmatprep.subr.mxu0 0.0
        %2746 = vmatpush1.msra.mxu0 0.0
        %2747 = vmatprep.subr.mxu0 0.0
        %2748 = vmatpush1.msra.mxu0 0.0
        %2749 = vmatprep.subr.mxu0 0.0
        %2750 = vmatpush1.msra.mxu0 0.0
        %2751 = vmatprep.subr.mxu0 0.0
        %2752 = vmatpush1.msra.mxu0 0.0
        %2753 = vmatprep.mubr.f32.mxu0 0.0
        %2754 = vmatmul.mubr.f32.gmra.mrb[0].mxu0 %v2687
        %v2755 = vpop.f32.mrb[0].mxu0
        %v2756 = vadd.f32 0.0, %v2755
        %v2757 = vpop.f32.mrb[0].mxu0
        %2758 = vdwg.mxu0
        %v2759 = vadd.f32 %v2676, %v2756
        %s2760 = scalar_lea.vmem %s6, 576
        %v2761 = vld [vmem:[%s2760] sm:$0xff]
        %v2762 = vld [vmem:[%s2760 + $0x8] sm:$0xff]
        %v2763 = vld [vmem:[%s2760 + $0x10] sm:$0xff]
        %v2764 = vld [vmem:[%s2760 + $0x18] sm:$0xff]
        %v2765 = vld [vmem:[%s2760 + $0x20] sm:$0xff]
        %v2766 = vld [vmem:[%s2760 + $0x28] sm:$0xff]
        %v2767 = vld [vmem:[%s2760 + $0x30] sm:$0xff]
        %v2768 = vld [vmem:[%s2760 + $0x38] sm:$0xff]
        %v2769 = vrot.slane %v2014, 1
        %v2770 = vsel %vm2034, %v2769, 0
        %2772 = vmatprep.subr.mxu0 0.0
        %2773 = vmatpush1.msra.mxu0 %v2761
        %2774 = vmatprep.subr.mxu0 0.0
        %2775 = vmatpush1.msra.mxu0 %v2762
        %2776 = vmatprep.subr.mxu0 0.0
        %2777 = vmatpush1.msra.mxu0 %v2763
        %2778 = vmatprep.subr.mxu0 0.0
        %2779 = vmatpush1.msra.mxu0 %v2764
        %2780 = vmatprep.subr.mxu0 0.0
        %2781 = vmatpush1.msra.mxu0 %v2765
        %2782 = vmatprep.subr.mxu0 0.0
        %2783 = vmatpush1.msra.mxu0 %v2766
        %2784 = vmatprep.subr.mxu0 0.0
        %2785 = vmatpush1.msra.mxu0 %v2767
        %2786 = vmatprep.subr.mxu0 0.0
        %2787 = vmatpush1.msra.mxu0 %v2768
        %2788 = vmatprep.subr.mxu0 0.0
        %2789 = vmatpush1.msra.mxu0 0.0
        %2790 = vmatprep.subr.mxu0 0.0
        %2791 = vmatpush1.msra.mxu0 0.0
        %2792 = vmatprep.subr.mxu0 0.0
        %2793 = vmatpush1.msra.mxu0 0.0
        %2794 = vmatprep.subr.mxu0 0.0
        %2795 = vmatpush1.msra.mxu0 0.0
        %2796 = vmatprep.subr.mxu0 0.0
        %2797 = vmatpush1.msra.mxu0 0.0
        %2798 = vmatprep.subr.mxu0 0.0
        %2799 = vmatpush1.msra.mxu0 0.0
        %2800 = vmatprep.subr.mxu0 0.0
        %2801 = vmatpush1.msra.mxu0 0.0
        %2802 = vmatprep.subr.mxu0 0.0
        %2803 = vmatpush1.msra.mxu0 0.0
        %2804 = vmatprep.subr.mxu0 0.0
        %2805 = vmatpush1.msra.mxu0 0.0
        %2806 = vmatprep.subr.mxu0 0.0
        %2807 = vmatpush1.msra.mxu0 0.0
        %2808 = vmatprep.subr.mxu0 0.0
        %2809 = vmatpush1.msra.mxu0 0.0
        %2810 = vmatprep.subr.mxu0 0.0
        %2811 = vmatpush1.msra.mxu0 0.0
        %2812 = vmatprep.subr.mxu0 0.0
        %2813 = vmatpush1.msra.mxu0 0.0
        %2814 = vmatprep.subr.mxu0 0.0
        %2815 = vmatpush1.msra.mxu0 0.0
        %2816 = vmatprep.subr.mxu0 0.0
        %2817 = vmatpush1.msra.mxu0 0.0
        %2818 = vmatprep.subr.mxu0 0.0
        %2819 = vmatpush1.msra.mxu0 0.0
        %2820 = vmatprep.subr.mxu0 0.0
        %2821 = vmatpush1.msra.mxu0 0.0
        %2822 = vmatprep.subr.mxu0 0.0
        %2823 = vmatpush1.msra.mxu0 0.0
        %2824 = vmatprep.subr.mxu0 0.0
        %2825 = vmatpush1.msra.mxu0 0.0
        %2826 = vmatprep.subr.mxu0 0.0
        %2827 = vmatpush1.msra.mxu0 0.0
        %2828 = vmatprep.subr.mxu0 0.0
        %2829 = vmatpush1.msra.mxu0 0.0
        %2830 = vmatprep.subr.mxu0 0.0
        %2831 = vmatpush1.msra.mxu0 0.0
        %2832 = vmatprep.subr.mxu0 0.0
        %2833 = vmatpush1.msra.mxu0 0.0
        %2834 = vmatprep.subr.mxu0 0.0
        %2835 = vmatpush1.msra.mxu0 0.0
        %2836 = vmatprep.mubr.f32.mxu0 0.0
        %2837 = vmatmul.mubr.f32.gmra.mrb[0].mxu0 %v2770
        %v2838 = vpop.f32.mrb[0].mxu0
        %v2839 = vadd.f32 0.0, %v2838
        %v2840 = vpop.f32.mrb[0].mxu0
        %2841 = vdwg.mxu0
        %v2842 = vadd.f32 %v2759, %v2839
        %v2843 = vld [vmem:[%s7] sm:$0x1]
        %v2844 = vadd.f32 %v2842, %v2843
        %vm2845 = vcmask 8192
        %2846 = vst.msk [vmem:[%s318] sm:$0x1] %vm2845, %v2844
        %s2847 = sand.u32 %s208, 1
        %s2848 = scalar_lea.sflag [#allocation3], %s2847
        %s2849 = sand.u32 %s208, 1
        %s2850 = scalar_lea.vmem [#allocation2], %s2849
        // Predicated region
        $region53: #{model_forward.1} parent=51 // pred_check
          %p2851 = pneg %p218
        $region54: #{model_forward.1} parent=51 // pred_check_branch
          %2853 = sbr.rel (%p2851) target = $region56
        $region55: #{model_forward.1} parent=51 // pred_region
          %s2855 = ssub.s32 16, 16
          %2856 = vsyncadd %s2848, %s2855
          %s2857 = smul.addr %s22, 16
          %s2858 = scalar_lea.hbm %s8, %s2857
          %s2860 = sshll.u32 %s2850, 4
          %s2861 = int_to_ptr.vmem [resolvable:$true] %s2860
          %2863 = dma.vmem_to_hbm [thread:$0]  %s2861, 16, %s2858, %s2848
        $region56: #{model_forward.1} parent=51 // pred_fallthru
          _
      $region52: #{model_forward.1} parent=5 // pred_fallthru
        _
      %p2864 = scmp.le.s32.totalorder 2, %s17
      // Predicated region
      $region57: #{model_forward.1} parent=5 // pred_check
        %p2865 = pneg %p2864
      $region58: #{model_forward.1} parent=5 // pred_check_branch
        %2867 = sbr.rel (%p2865) target = $region60
      $region59: #{model_forward.1} parent=5 // pred_region
        %s2868 = ssub.s32 %s17, 2
        // Predicated region
        $region61: #{model_forward.1} parent=59 // pred_check
          %p2869 = pneg %p224
        $region62: #{model_forward.1} parent=59 // pred_check_branch
          %2871 = sbr.rel (%p2869) target = $region64
        $region63: #{model_forward.1} parent=59 // pred_region
          %s2872 = sand.u32 %s209, 1
          %s2873 = scalar_lea.sflag [#allocation3], %s2872
          %s2874 = sand.u32 %s209, 1
          %s2875 = scalar_lea.vmem [#allocation2], %s2874
          %2876 = dma.done %s2873, 16
        $region64: #{model_forward.1} parent=59 // pred_fallthru
          _
      $region60: #{model_forward.1} parent=5 // pred_fallthru
        _
    $region6: #{model_forward.1} parent=1 // loop_footer
      %s21 = sadd.s32 1, %s17
    $region7: #{model_forward.1} parent=1 // loop_footer_branch
      %16 = sbr.rel target = $region3
    $region8: #{model_forward.1} parent=1 // loop_exit
      _
    %2877 = vsyncpa [#allocation3], 1
    %s2878 = scalar_lea.sflag [#allocation3], 1
    %2879 = vsyncpa %s2878, 1

</llo_original>
